<compile_context>
chip_gen: v5e
topology: v5e:2x2
jax: 0.10.0
libtpu: 0.0.40
codegen_flags: <defaults>
</compile_context>

<pallas_src>
import jax
import jax.numpy as jnp
from jax.experimental import pallas as pl
from jax.experimental.pallas import tpu as pltpu


# ----------------------------------------------------------------------------
# Fused kernel: all LSTM layers + ReLU + Linear for one batch tile (time-major)
# ----------------------------------------------------------------------------
def _make_fused_lstm_kernel(L, T, Bt, D, H, C):
  """Builds the fused kernel for static (L, T, Bt, D, H, C).

  Positional refs:
    x_ref                      (T, Bt, D)  bf16   time-major input tile
    [w_ih, w_hh, b] * L        (in,4H) bf16, (H,4H) bf16, (1,4H) f32
    fc_w_ref                   (H, C)      bf16
    fc_b_ref                   (1, C)      f32
    o_ref                      (T, Bt, C)  f32    output tile (written once)
    hseq                       (T, Bt, H)  bf16   VMEM scratch: hidden sequence

  Packed gate column order is (i, f, o, g): one wide sigmoid covers lanes
  [:3H] and one tanh covers [3H:], i.e. 2 EUP pushes per recurrent step.
  """

  def kernel(*refs):
    x_ref = refs[0]
    layer_refs = refs[1:1 + 3 * L]
    fc_w_ref = refs[1 + 3 * L]
    fc_b_ref = refs[2 + 3 * L]
    o_ref = refs[3 + 3 * L]
    hseq = refs[4 + 3 * L]

    # Time-major, already bf16: per-step slices below are contiguous slabs.
    layer_in = x_ref[...].reshape(T * Bt, D)

    for l in range(L):
      w_ih = layer_refs[3 * l][...]       # (in_dim, 4H) bf16, VMEM-resident
      w_hh = layer_refs[3 * l + 1][...]   # (H, 4H)      bf16
      b = layer_refs[3 * l + 2][...]      # (1, 4H)      f32 (b_ih + b_hh)

      # Hoisted input projection: one MXU matmul for the whole sequence,
      # taken off the serial recurrent path.
      gx = (jnp.dot(layer_in, w_ih, preferred_element_type=jnp.float32)
            + b).reshape(T, Bt, 4 * H)                                   # f32

      h_bf = jnp.zeros((Bt, H), jnp.bfloat16)
      c = jnp.zeros((Bt, H), jnp.float32)

      # T is small & static -> fully unrolled serial recurrence.
      # TODO(synk): move gx to a VMEM scratch and use lax.fori_loop(unroll=2..4)
      #             if T (or L*T) grows beyond ~16-32 unrolled steps.
      for t in range(T):
        gates = gx[t] + jnp.dot(h_bf, w_hh,
                                preferred_element_type=jnp.float32)      # (Bt,4H)
        sig = jax.nn.sigmoid(gates[:, :3 * H])   # i | f | o in one EUP pass
        g_g = jnp.tanh(gates[:, 3 * H:])
        i_g = sig[:, 0 * H:1 * H]
        f_g = sig[:, 1 * H:2 * H]
        o_g = sig[:, 2 * H:3 * H]
        c = f_g * c + i_g * g_g
        h_bf = (o_g * jnp.tanh(c)).astype(jnp.bfloat16)  # single per-step cast
        hseq[t] = h_bf                                   # contiguous slab store

      layer_in = hseq[...].reshape(T * Bt, H)            # bf16, no extra cast

    # ReLU + Linear over the whole tile; single one-shot output store.
    act = jnp.maximum(layer_in, 0)                       # bf16 ReLU (exact)
    out = (jnp.dot(act, fc_w_ref[...], preferred_element_type=jnp.float32)
           + fc_b_ref[...])                              # (T*Bt, C) f32
    o_ref[...] = out.reshape(T, Bt, C)

  return kernel


# ----------------------------------------------------------------------------
# Wrapper
# ----------------------------------------------------------------------------
def _pick_batch_tile(B):
  """Largest multiple-of-8 divisor of B giving >= 2 tiles (megacore), else B."""
  if B <= 8 or B % 8 != 0:
    return B
  for bt in (128, 64, 32, 16, 8):
    if bt < B and B % bt == 0:
      return bt
  return B


@jax.jit
def lstm_model_forward(params, x_btd):
  """Forward pass of LSTM_model (mode='LSTM').

  x_btd: (B, T, input_size) batch-first  ->  (B, T, class_num)
  """
  B, T, D = x_btd.shape
  L = len(params['lstm'])
  H = params['lstm'][0]['w_hh'].shape[0]
  C = params['fc_w'].shape[1]
  Bt = _pick_batch_tile(B)
  nb = B // Bt

  kernel = _make_fused_lstm_kernel(L, T, Bt, D, H, C)

  # One transpose each way in the wrapper (off the recurrent critical path);
  # bf16 input halves the HBM->VMEM DMA bytes.
  x_tbd = jnp.transpose(x_btd, (1, 0, 2)).astype(jnp.bfloat16)

  args = [x_tbd]
  in_specs = [pl.BlockSpec((T, Bt, D), lambda b: (0, b, 0))]
  for layer in params['lstm']:
    in_dim = layer['w_ih'].shape[0]
    args.extend([layer['w_ih'], layer['w_hh'], layer['b']])
    in_specs.extend([
        pl.BlockSpec((in_dim, 4 * H), lambda b: (0, 0)),   # weights stay resident
        pl.BlockSpec((H, 4 * H), lambda b: (0, 0)),
        pl.BlockSpec((1, 4 * H), lambda b: (0, 0)),
    ])
  args.extend([params['fc_w'], params['fc_b']])
  in_specs.extend([
      pl.BlockSpec((H, C), lambda b: (0, 0)),
      pl.BlockSpec((1, C), lambda b: (0, 0)),
  ])

  # Per-tile VMEM budget: double-buffered x/o tiles + resident weights +
  # hseq scratch (bf16) + live gx value (f32). Clamped under v7x's 64 MiB.
  w_bytes = sum(w.size * w.dtype.itemsize
                for layer in params['lstm'] for w in layer.values())
  w_bytes += params['fc_w'].size * 2 + params['fc_b'].size * 4
  tile_bytes = (2 * (T * Bt * D * 2 + T * Bt * C * 4)
                + 2 * w_bytes
                + T * Bt * H * 2
                + T * Bt * 4 * H * 4)
  vmem_limit = int(min(max(4 * tile_bytes + (8 << 20), 32 << 20), 60 << 20))

  flops = 2 * B * T * H * C
  for layer in params['lstm']:
    flops += 2 * B * T * (layer['w_ih'].shape[0] + H) * 4 * H
  cost = pl.CostEstimate(
      flops=flops,
      transcendentals=5 * L * B * T * H,
      bytes_accessed=x_tbd.size * 2 + B * T * C * 4 + w_bytes,
  )

  out_tbc = pl.pallas_call(
      kernel,
      out_shape=jax.ShapeDtypeStruct((T, B, C), jnp.float32),
      grid_spec=pltpu.PrefetchScalarGridSpec(
          num_scalar_prefetch=0,
          grid=(nb,),
          in_specs=in_specs,
          out_specs=pl.BlockSpec((T, Bt, C), lambda b: (0, b, 0)),
          scratch_shapes=[pltpu.VMEM((T, Bt, H), jnp.bfloat16)],
      ),
      compiler_params=pltpu.CompilerParams(
          dimension_semantics=("parallel",),
          vmem_limit_bytes=vmem_limit,
      ),
      cost_estimate=cost,
  )(*args)

  return jnp.transpose(out_tbc, (1, 0, 2))


# ----------------------------------------------------------------------------
# Parameter init (PyTorch-like uniform(-1/sqrt(H), 1/sqrt(H)))
# ----------------------------------------------------------------------------
def init_params(key, config):
  D = config['input_size']
  H = config['hidden_size']
  L = config['num_layers']
  C = config['class_num']
  bound = 1.0 / (H ** 0.5)

  params = {'lstm': []}
  for layer in range(L):
    in_dim = D if layer == 0 else H
    key, k1, k2, k3, k4 = jax.random.split(key, 5)
    # Stored pre-transposed for x @ W matmuls with packed gate order (i,f,o,g).
    # (To load real PyTorch weights: transpose weight_ih/hh_l{k} and permute the
    #  gate columns from PyTorch's (i,f,g,o) to (i,f,o,g); same for the biases.)
    w_ih = jax.random.uniform(k1, (in_dim, 4 * H), jnp.float32, -bound, bound)
    w_hh = jax.random.uniform(k2, (H, 4 * H), jnp.float32, -bound, bound)
    b_ih = jax.random.uniform(k3, (4 * H,), jnp.float32, -bound, bound)
    b_hh = jax.random.uniform(k4, (4 * H,), jnp.float32, -bound, bound)
    params['lstm'].append({
        'w_ih': w_ih.astype(jnp.bfloat16),          # MXU operands in bf16
        'w_hh': w_hh.astype(jnp.bfloat16),
        'b': (b_ih + b_hh).reshape(1, 4 * H),       # bias stays f32
    })

  key, k5, k6 = jax.random.split(key, 3)
  params['fc_w'] = jax.random.uniform(k5, (H, C), jnp.float32,
                                      -bound, bound).astype(jnp.bfloat16)
  params['fc_b'] = jax.random.uniform(k6, (1, C), jnp.float32, -bound, bound)
  return params


# ----------------------------------------------------------------------------
if __name__ == "__main__":
  config = {
      'input_size': 16,
      'hidden_size': 32,
      'num_layers': 2,
      'class_num': 8,
      'mode': 'LSTM',
  }
  B, T = 16, 8   # B a multiple of 8 -> 2 batch tiles -> parallel grid

  key = jax.random.PRNGKey(0)
  key, xk = jax.random.split(key)
  x = jax.random.normal(xk, (B, T, config['input_size']), jnp.float32)

  params = init_params(key, config)
  out = lstm_model_forward(params, x)
  out = jax.block_until_ready(out)

  assert out.shape == (B, T, config['class_num']), out.shape
  assert bool(jnp.all(jnp.isfinite(out)))
  print("KERNEL_OK")
</pallas_src>

<mosaic_0001>
module attributes {stable_mosaic.version = 11 : i64} {
  func.func @kernel(%arg0: i32, %arg1: memref<8x8x16xbf16, #tpu.memory_space<vmem>>, %arg2: memref<16x128xbf16, #tpu.memory_space<vmem>>, %arg3: memref<32x128xbf16, #tpu.memory_space<vmem>>, %arg4: memref<1x128xf32, #tpu.memory_space<vmem>>, %arg5: memref<32x128xbf16, #tpu.memory_space<vmem>>, %arg6: memref<32x128xbf16, #tpu.memory_space<vmem>>, %arg7: memref<1x128xf32, #tpu.memory_space<vmem>>, %arg8: memref<32x8xbf16, #tpu.memory_space<vmem>>, %arg9: memref<1x8xf32, #tpu.memory_space<vmem>>, %arg10: memref<8x8x8xf32, #tpu.memory_space<vmem>>, %arg11: memref<8x8x32xbf16, #tpu.memory_space<vmem>>) attributes {dimension_semantics = [#tpu.dimension_semantics<parallel>], iteration_bounds = array<i64: 2>, scalar_prefetch = 0 : i64, scratch_operands = 1 : i64, tpu.core_type = #tpu.core_type<tc>, window_params = [{transform_indices = @transform_0, window_bounds = array<i64: 8, 8, 16>}, {pipeline_mode = #tpu.pipeline_mode<synchronous>, transform_indices = @transform_1, window_bounds = array<i64: 16, 128>}, {pipeline_mode = #tpu.pipeline_mode<synchronous>, transform_indices = @transform_2, window_bounds = array<i64: 32, 128>}, {pipeline_mode = #tpu.pipeline_mode<synchronous>, transform_indices = @transform_3, window_bounds = array<i64: 1, 128>}, {pipeline_mode = #tpu.pipeline_mode<synchronous>, transform_indices = @transform_4, window_bounds = array<i64: 32, 128>}, {pipeline_mode = #tpu.pipeline_mode<synchronous>, transform_indices = @transform_5, window_bounds = array<i64: 32, 128>}, {pipeline_mode = #tpu.pipeline_mode<synchronous>, transform_indices = @transform_6, window_bounds = array<i64: 1, 128>}, {pipeline_mode = #tpu.pipeline_mode<synchronous>, transform_indices = @transform_7, window_bounds = array<i64: 32, 8>}, {pipeline_mode = #tpu.pipeline_mode<synchronous>, transform_indices = @transform_8, window_bounds = array<i64: 1, 8>}, {transform_indices = @transform_9, window_bounds = array<i64: 8, 8, 8>}]} {
    %c0 = arith.constant 0 : index
    %c0_0 = arith.constant 0 : index
    %c0_1 = arith.constant 0 : index
    %0 = vector.load %arg1[%c0, %c0_0, %c0_1] : memref<8x8x16xbf16, #tpu.memory_space<vmem>>, vector<8x8x16xbf16>
    %1 = vector.shape_cast %0 : vector<8x8x16xbf16> to vector<64x16xbf16>
    %c0_2 = arith.constant 0 : index
    %c0_3 = arith.constant 0 : index
    %2 = vector.load %arg2[%c0_2, %c0_3] : memref<16x128xbf16, #tpu.memory_space<vmem>>, vector<16x128xbf16>
    %c0_4 = arith.constant 0 : index
    %c0_5 = arith.constant 0 : index
    %3 = vector.load %arg3[%c0_4, %c0_5] : memref<32x128xbf16, #tpu.memory_space<vmem>>, vector<32x128xbf16>
    %c0_6 = arith.constant 0 : index
    %c0_7 = arith.constant 0 : index
    %4 = vector.load %arg4[%c0_6, %c0_7] : memref<1x128xf32, #tpu.memory_space<vmem>>, vector<1x128xf32>
    %cst = arith.constant dense<0.000000e+00> : vector<64x128xf32>
    %5 = tpu.matmul %1, %2, %cst {dimension_numbers = #tpu.dot_dimension_numbers<[1], [0], [0], [1], [0, 0, 1, 1], [], []>} : vector<64x16xbf16>, vector<16x128xbf16>, vector<64x128xf32> -> vector<64x128xf32>
    %6 = vector.broadcast %4 : vector<1x128xf32> to vector<64x128xf32>
    %7 = arith.addf %5, %6 : vector<64x128xf32>
    %8 = vector.shape_cast %7 : vector<64x128xf32> to vector<8x8x128xf32>
    %cst_8 = arith.constant 0.000000e+00 : bf16
    %9 = vector.broadcast %cst_8 : bf16 to vector<8x32xbf16>
    %cst_9 = arith.constant 0.000000e+00 : f32
    %10 = vector.broadcast %cst_9 : f32 to vector<8x32xf32>
    %11 = vector.extract_strided_slice %8 {offsets = [0, 0, 0], sizes = [1, 8, 128], strides = [1, 1, 1]} : vector<8x8x128xf32> to vector<1x8x128xf32>
    %12 = vector.shape_cast %11 : vector<1x8x128xf32> to vector<8x128xf32>
    %cst_10 = arith.constant dense<0.000000e+00> : vector<8x128xf32>
    %13 = tpu.matmul %9, %3, %cst_10 {dimension_numbers = #tpu.dot_dimension_numbers<[1], [0], [0], [1], [0, 0, 1, 1], [], []>} : vector<8x32xbf16>, vector<32x128xbf16>, vector<8x128xf32> -> vector<8x128xf32>
    %14 = arith.addf %12, %13 : vector<8x128xf32>
    %15 = vector.extract_strided_slice %14 {offsets = [0, 0], sizes = [8, 96], strides = [1, 1]} : vector<8x128xf32> to vector<8x96xf32>
    %16 = arith.negf %15 : vector<8x96xf32>
    %17 = math.exp %16 : vector<8x96xf32>
    %cst_11 = arith.constant 1.000000e+00 : f32
    %18 = vector.broadcast %cst_11 : f32 to vector<8x96xf32>
    %19 = arith.addf %18, %17 : vector<8x96xf32>
    %20 = arith.divf %18, %19 : vector<8x96xf32>
    %21 = vector.extract_strided_slice %14 {offsets = [0, 96], sizes = [8, 32], strides = [1, 1]} : vector<8x128xf32> to vector<8x32xf32>
    %22 = math.tanh %21 : vector<8x32xf32>
    %23 = vector.extract_strided_slice %20 {offsets = [0, 0], sizes = [8, 32], strides = [1, 1]} : vector<8x96xf32> to vector<8x32xf32>
    %24 = vector.extract_strided_slice %20 {offsets = [0, 32], sizes = [8, 32], strides = [1, 1]} : vector<8x96xf32> to vector<8x32xf32>
    %25 = vector.extract_strided_slice %20 {offsets = [0, 64], sizes = [8, 32], strides = [1, 1]} : vector<8x96xf32> to vector<8x32xf32>
    %26 = arith.mulf %24, %10 : vector<8x32xf32>
    %27 = arith.mulf %23, %22 : vector<8x32xf32>
    %28 = arith.addf %26, %27 : vector<8x32xf32>
    %29 = math.tanh %28 : vector<8x32xf32>
    %30 = arith.mulf %25, %29 : vector<8x32xf32>
    %31 = arith.truncf %30 : vector<8x32xf32> to vector<8x32xbf16>
    %c0_12 = arith.constant 0 : index
    %c0_13 = arith.constant 0 : index
    %c0_14 = arith.constant 0 : index
    %32 = vector.load %arg11[%c0_12, %c0_13, %c0_14] : memref<8x8x32xbf16, #tpu.memory_space<vmem>>, vector<1x8x32xbf16>
    %33 = vector.shape_cast %32 : vector<1x8x32xbf16> to vector<8x32xbf16>
    %34 = vector.shape_cast %31 : vector<8x32xbf16> to vector<1x8x32xbf16>
    tpu.vector_store %arg11[%c0_12, %c0_13, %c0_14], %34 {strides = array<i32>} : memref<8x8x32xbf16, #tpu.memory_space<vmem>>, vector<1x8x32xbf16>,
    %35 = vector.extract_strided_slice %8 {offsets = [1, 0, 0], sizes = [1, 8, 128], strides = [1, 1, 1]} : vector<8x8x128xf32> to vector<1x8x128xf32>
    %36 = vector.shape_cast %35 : vector<1x8x128xf32> to vector<8x128xf32>
    %cst_15 = arith.constant dense<0.000000e+00> : vector<8x128xf32>
    %37 = tpu.matmul %31, %3, %cst_15 {dimension_numbers = #tpu.dot_dimension_numbers<[1], [0], [0], [1], [0, 0, 1, 1], [], []>} : vector<8x32xbf16>, vector<32x128xbf16>, vector<8x128xf32> -> vector<8x128xf32>
    %38 = arith.addf %36, %37 : vector<8x128xf32>
    %39 = vector.extract_strided_slice %38 {offsets = [0, 0], sizes = [8, 96], strides = [1, 1]} : vector<8x128xf32> to vector<8x96xf32>
    %40 = arith.negf %39 : vector<8x96xf32>
    %41 = math.exp %40 : vector<8x96xf32>
    %cst_16 = arith.constant 1.000000e+00 : f32
    %42 = vector.broadcast %cst_16 : f32 to vector<8x96xf32>
    %43 = arith.addf %42, %41 : vector<8x96xf32>
    %44 = arith.divf %42, %43 : vector<8x96xf32>
    %45 = vector.extract_strided_slice %38 {offsets = [0, 96], sizes = [8, 32], strides = [1, 1]} : vector<8x128xf32> to vector<8x32xf32>
    %46 = math.tanh %45 : vector<8x32xf32>
    %47 = vector.extract_strided_slice %44 {offsets = [0, 0], sizes = [8, 32], strides = [1, 1]} : vector<8x96xf32> to vector<8x32xf32>
    %48 = vector.extract_strided_slice %44 {offsets = [0, 32], sizes = [8, 32], strides = [1, 1]} : vector<8x96xf32> to vector<8x32xf32>
    %49 = vector.extract_strided_slice %44 {offsets = [0, 64], sizes = [8, 32], strides = [1, 1]} : vector<8x96xf32> to vector<8x32xf32>
    %50 = arith.mulf %48, %28 : vector<8x32xf32>
    %51 = arith.mulf %47, %46 : vector<8x32xf32>
    %52 = arith.addf %50, %51 : vector<8x32xf32>
    %53 = math.tanh %52 : vector<8x32xf32>
    %54 = arith.mulf %49, %53 : vector<8x32xf32>
    %55 = arith.truncf %54 : vector<8x32xf32> to vector<8x32xbf16>
    %c1 = arith.constant 1 : index
    %c0_17 = arith.constant 0 : index
    %c0_18 = arith.constant 0 : index
    %56 = vector.load %arg11[%c1, %c0_17, %c0_18] : memref<8x8x32xbf16, #tpu.memory_space<vmem>>, vector<1x8x32xbf16>
    %57 = vector.shape_cast %56 : vector<1x8x32xbf16> to vector<8x32xbf16>
    %58 = vector.shape_cast %55 : vector<8x32xbf16> to vector<1x8x32xbf16>
    tpu.vector_store %arg11[%c1, %c0_17, %c0_18], %58 {strides = array<i32>} : memref<8x8x32xbf16, #tpu.memory_space<vmem>>, vector<1x8x32xbf16>,
    %59 = vector.extract_strided_slice %8 {offsets = [2, 0, 0], sizes = [1, 8, 128], strides = [1, 1, 1]} : vector<8x8x128xf32> to vector<1x8x128xf32>
    %60 = vector.shape_cast %59 : vector<1x8x128xf32> to vector<8x128xf32>
    %cst_19 = arith.constant dense<0.000000e+00> : vector<8x128xf32>
    %61 = tpu.matmul %55, %3, %cst_19 {dimension_numbers = #tpu.dot_dimension_numbers<[1], [0], [0], [1], [0, 0, 1, 1], [], []>} : vector<8x32xbf16>, vector<32x128xbf16>, vector<8x128xf32> -> vector<8x128xf32>
    %62 = arith.addf %60, %61 : vector<8x128xf32>
    %63 = vector.extract_strided_slice %62 {offsets = [0, 0], sizes = [8, 96], strides = [1, 1]} : vector<8x128xf32> to vector<8x96xf32>
    %64 = arith.negf %63 : vector<8x96xf32>
    %65 = math.exp %64 : vector<8x96xf32>
    %cst_20 = arith.constant 1.000000e+00 : f32
    %66 = vector.broadcast %cst_20 : f32 to vector<8x96xf32>
    %67 = arith.addf %66, %65 : vector<8x96xf32>
    %68 = arith.divf %66, %67 : vector<8x96xf32>
    %69 = vector.extract_strided_slice %62 {offsets = [0, 96], sizes = [8, 32], strides = [1, 1]} : vector<8x128xf32> to vector<8x32xf32>
    %70 = math.tanh %69 : vector<8x32xf32>
    %71 = vector.extract_strided_slice %68 {offsets = [0, 0], sizes = [8, 32], strides = [1, 1]} : vector<8x96xf32> to vector<8x32xf32>
    %72 = vector.extract_strided_slice %68 {offsets = [0, 32], sizes = [8, 32], strides = [1, 1]} : vector<8x96xf32> to vector<8x32xf32>
    %73 = vector.extract_strided_slice %68 {offsets = [0, 64], sizes = [8, 32], strides = [1, 1]} : vector<8x96xf32> to vector<8x32xf32>
    %74 = arith.mulf %72, %52 : vector<8x32xf32>
    %75 = arith.mulf %71, %70 : vector<8x32xf32>
    %76 = arith.addf %74, %75 : vector<8x32xf32>
    %77 = math.tanh %76 : vector<8x32xf32>
    %78 = arith.mulf %73, %77 : vector<8x32xf32>
    %79 = arith.truncf %78 : vector<8x32xf32> to vector<8x32xbf16>
    %c2 = arith.constant 2 : index
    %c0_21 = arith.constant 0 : index
    %c0_22 = arith.constant 0 : index
    %80 = vector.load %arg11[%c2, %c0_21, %c0_22] : memref<8x8x32xbf16, #tpu.memory_space<vmem>>, vector<1x8x32xbf16>
    %81 = vector.shape_cast %80 : vector<1x8x32xbf16> to vector<8x32xbf16>
    %82 = vector.shape_cast %79 : vector<8x32xbf16> to vector<1x8x32xbf16>
    tpu.vector_store %arg11[%c2, %c0_21, %c0_22], %82 {strides = array<i32>} : memref<8x8x32xbf16, #tpu.memory_space<vmem>>, vector<1x8x32xbf16>,
    %83 = vector.extract_strided_slice %8 {offsets = [3, 0, 0], sizes = [1, 8, 128], strides = [1, 1, 1]} : vector<8x8x128xf32> to vector<1x8x128xf32>
    %84 = vector.shape_cast %83 : vector<1x8x128xf32> to vector<8x128xf32>
    %cst_23 = arith.constant dense<0.000000e+00> : vector<8x128xf32>
    %85 = tpu.matmul %79, %3, %cst_23 {dimension_numbers = #tpu.dot_dimension_numbers<[1], [0], [0], [1], [0, 0, 1, 1], [], []>} : vector<8x32xbf16>, vector<32x128xbf16>, vector<8x128xf32> -> vector<8x128xf32>
    %86 = arith.addf %84, %85 : vector<8x128xf32>
    %87 = vector.extract_strided_slice %86 {offsets = [0, 0], sizes = [8, 96], strides = [1, 1]} : vector<8x128xf32> to vector<8x96xf32>
    %88 = arith.negf %87 : vector<8x96xf32>
    %89 = math.exp %88 : vector<8x96xf32>
    %cst_24 = arith.constant 1.000000e+00 : f32
    %90 = vector.broadcast %cst_24 : f32 to vector<8x96xf32>
    %91 = arith.addf %90, %89 : vector<8x96xf32>
    %92 = arith.divf %90, %91 : vector<8x96xf32>
    %93 = vector.extract_strided_slice %86 {offsets = [0, 96], sizes = [8, 32], strides = [1, 1]} : vector<8x128xf32> to vector<8x32xf32>
    %94 = math.tanh %93 : vector<8x32xf32>
    %95 = vector.extract_strided_slice %92 {offsets = [0, 0], sizes = [8, 32], strides = [1, 1]} : vector<8x96xf32> to vector<8x32xf32>
    %96 = vector.extract_strided_slice %92 {offsets = [0, 32], sizes = [8, 32], strides = [1, 1]} : vector<8x96xf32> to vector<8x32xf32>
    %97 = vector.extract_strided_slice %92 {offsets = [0, 64], sizes = [8, 32], strides = [1, 1]} : vector<8x96xf32> to vector<8x32xf32>
    %98 = arith.mulf %96, %76 : vector<8x32xf32>
    %99 = arith.mulf %95, %94 : vector<8x32xf32>
    %100 = arith.addf %98, %99 : vector<8x32xf32>
    %101 = math.tanh %100 : vector<8x32xf32>
    %102 = arith.mulf %97, %101 : vector<8x32xf32>
    %103 = arith.truncf %102 : vector<8x32xf32> to vector<8x32xbf16>
    %c3 = arith.constant 3 : index
    %c0_25 = arith.constant 0 : index
    %c0_26 = arith.constant 0 : index
    %104 = vector.load %arg11[%c3, %c0_25, %c0_26] : memref<8x8x32xbf16, #tpu.memory_space<vmem>>, vector<1x8x32xbf16>
    %105 = vector.shape_cast %104 : vector<1x8x32xbf16> to vector<8x32xbf16>
    %106 = vector.shape_cast %103 : vector<8x32xbf16> to vector<1x8x32xbf16>
    tpu.vector_store %arg11[%c3, %c0_25, %c0_26], %106 {strides = array<i32>} : memref<8x8x32xbf16, #tpu.memory_space<vmem>>, vector<1x8x32xbf16>,
    %107 = vector.extract_strided_slice %8 {offsets = [4, 0, 0], sizes = [1, 8, 128], strides = [1, 1, 1]} : vector<8x8x128xf32> to vector<1x8x128xf32>
    %108 = vector.shape_cast %107 : vector<1x8x128xf32> to vector<8x128xf32>
    %cst_27 = arith.constant dense<0.000000e+00> : vector<8x128xf32>
    %109 = tpu.matmul %103, %3, %cst_27 {dimension_numbers = #tpu.dot_dimension_numbers<[1], [0], [0], [1], [0, 0, 1, 1], [], []>} : vector<8x32xbf16>, vector<32x128xbf16>, vector<8x128xf32> -> vector<8x128xf32>
    %110 = arith.addf %108, %109 : vector<8x128xf32>
    %111 = vector.extract_strided_slice %110 {offsets = [0, 0], sizes = [8, 96], strides = [1, 1]} : vector<8x128xf32> to vector<8x96xf32>
    %112 = arith.negf %111 : vector<8x96xf32>
    %113 = math.exp %112 : vector<8x96xf32>
    %cst_28 = arith.constant 1.000000e+00 : f32
    %114 = vector.broadcast %cst_28 : f32 to vector<8x96xf32>
    %115 = arith.addf %114, %113 : vector<8x96xf32>
    %116 = arith.divf %114, %115 : vector<8x96xf32>
    %117 = vector.extract_strided_slice %110 {offsets = [0, 96], sizes = [8, 32], strides = [1, 1]} : vector<8x128xf32> to vector<8x32xf32>
    %118 = math.tanh %117 : vector<8x32xf32>
    %119 = vector.extract_strided_slice %116 {offsets = [0, 0], sizes = [8, 32], strides = [1, 1]} : vector<8x96xf32> to vector<8x32xf32>
    %120 = vector.extract_strided_slice %116 {offsets = [0, 32], sizes = [8, 32], strides = [1, 1]} : vector<8x96xf32> to vector<8x32xf32>
    %121 = vector.extract_strided_slice %116 {offsets = [0, 64], sizes = [8, 32], strides = [1, 1]} : vector<8x96xf32> to vector<8x32xf32>
    %122 = arith.mulf %120, %100 : vector<8x32xf32>
    %123 = arith.mulf %119, %118 : vector<8x32xf32>
    %124 = arith.addf %122, %123 : vector<8x32xf32>
    %125 = math.tanh %124 : vector<8x32xf32>
    %126 = arith.mulf %121, %125 : vector<8x32xf32>
    %127 = arith.truncf %126 : vector<8x32xf32> to vector<8x32xbf16>
    %c4 = arith.constant 4 : index
    %c0_29 = arith.constant 0 : index
    %c0_30 = arith.constant 0 : index
    %128 = vector.load %arg11[%c4, %c0_29, %c0_30] : memref<8x8x32xbf16, #tpu.memory_space<vmem>>, vector<1x8x32xbf16>
    %129 = vector.shape_cast %128 : vector<1x8x32xbf16> to vector<8x32xbf16>
    %130 = vector.shape_cast %127 : vector<8x32xbf16> to vector<1x8x32xbf16>
    tpu.vector_store %arg11[%c4, %c0_29, %c0_30], %130 {strides = array<i32>} : memref<8x8x32xbf16, #tpu.memory_space<vmem>>, vector<1x8x32xbf16>,
    %131 = vector.extract_strided_slice %8 {offsets = [5, 0, 0], sizes = [1, 8, 128], strides = [1, 1, 1]} : vector<8x8x128xf32> to vector<1x8x128xf32>
    %132 = vector.shape_cast %131 : vector<1x8x128xf32> to vector<8x128xf32>
    %cst_31 = arith.constant dense<0.000000e+00> : vector<8x128xf32>
    %133 = tpu.matmul %127, %3, %cst_31 {dimension_numbers = #tpu.dot_dimension_numbers<[1], [0], [0], [1], [0, 0, 1, 1], [], []>} : vector<8x32xbf16>, vector<32x128xbf16>, vector<8x128xf32> -> vector<8x128xf32>
    %134 = arith.addf %132, %133 : vector<8x128xf32>
    %135 = vector.extract_strided_slice %134 {offsets = [0, 0], sizes = [8, 96], strides = [1, 1]} : vector<8x128xf32> to vector<8x96xf32>
    %136 = arith.negf %135 : vector<8x96xf32>
    %137 = math.exp %136 : vector<8x96xf32>
    %cst_32 = arith.constant 1.000000e+00 : f32
    %138 = vector.broadcast %cst_32 : f32 to vector<8x96xf32>
    %139 = arith.addf %138, %137 : vector<8x96xf32>
    %140 = arith.divf %138, %139 : vector<8x96xf32>
    %141 = vector.extract_strided_slice %134 {offsets = [0, 96], sizes = [8, 32], strides = [1, 1]} : vector<8x128xf32> to vector<8x32xf32>
    %142 = math.tanh %141 : vector<8x32xf32>
    %143 = vector.extract_strided_slice %140 {offsets = [0, 0], sizes = [8, 32], strides = [1, 1]} : vector<8x96xf32> to vector<8x32xf32>
    %144 = vector.extract_strided_slice %140 {offsets = [0, 32], sizes = [8, 32], strides = [1, 1]} : vector<8x96xf32> to vector<8x32xf32>
    %145 = vector.extract_strided_slice %140 {offsets = [0, 64], sizes = [8, 32], strides = [1, 1]} : vector<8x96xf32> to vector<8x32xf32>
    %146 = arith.mulf %144, %124 : vector<8x32xf32>
    %147 = arith.mulf %143, %142 : vector<8x32xf32>
    %148 = arith.addf %146, %147 : vector<8x32xf32>
    %149 = math.tanh %148 : vector<8x32xf32>
    %150 = arith.mulf %145, %149 : vector<8x32xf32>
    %151 = arith.truncf %150 : vector<8x32xf32> to vector<8x32xbf16>
    %c5 = arith.constant 5 : index
    %c0_33 = arith.constant 0 : index
    %c0_34 = arith.constant 0 : index
    %152 = vector.load %arg11[%c5, %c0_33, %c0_34] : memref<8x8x32xbf16, #tpu.memory_space<vmem>>, vector<1x8x32xbf16>
    %153 = vector.shape_cast %152 : vector<1x8x32xbf16> to vector<8x32xbf16>
    %154 = vector.shape_cast %151 : vector<8x32xbf16> to vector<1x8x32xbf16>
    tpu.vector_store %arg11[%c5, %c0_33, %c0_34], %154 {strides = array<i32>} : memref<8x8x32xbf16, #tpu.memory_space<vmem>>, vector<1x8x32xbf16>,
    %155 = vector.extract_strided_slice %8 {offsets = [6, 0, 0], sizes = [1, 8, 128], strides = [1, 1, 1]} : vector<8x8x128xf32> to vector<1x8x128xf32>
    %156 = vector.shape_cast %155 : vector<1x8x128xf32> to vector<8x128xf32>
    %cst_35 = arith.constant dense<0.000000e+00> : vector<8x128xf32>
    %157 = tpu.matmul %151, %3, %cst_35 {dimension_numbers = #tpu.dot_dimension_numbers<[1], [0], [0], [1], [0, 0, 1, 1], [], []>} : vector<8x32xbf16>, vector<32x128xbf16>, vector<8x128xf32> -> vector<8x128xf32>
    %158 = arith.addf %156, %157 : vector<8x128xf32>
    %159 = vector.extract_strided_slice %158 {offsets = [0, 0], sizes = [8, 96], strides = [1, 1]} : vector<8x128xf32> to vector<8x96xf32>
    %160 = arith.negf %159 : vector<8x96xf32>
    %161 = math.exp %160 : vector<8x96xf32>
    %cst_36 = arith.constant 1.000000e+00 : f32
    %162 = vector.broadcast %cst_36 : f32 to vector<8x96xf32>
    %163 = arith.addf %162, %161 : vector<8x96xf32>
    %164 = arith.divf %162, %163 : vector<8x96xf32>
    %165 = vector.extract_strided_slice %158 {offsets = [0, 96], sizes = [8, 32], strides = [1, 1]} : vector<8x128xf32> to vector<8x32xf32>
    %166 = math.tanh %165 : vector<8x32xf32>
    %167 = vector.extract_strided_slice %164 {offsets = [0, 0], sizes = [8, 32], strides = [1, 1]} : vector<8x96xf32> to vector<8x32xf32>
    %168 = vector.extract_strided_slice %164 {offsets = [0, 32], sizes = [8, 32], strides = [1, 1]} : vector<8x96xf32> to vector<8x32xf32>
    %169 = vector.extract_strided_slice %164 {offsets = [0, 64], sizes = [8, 32], strides = [1, 1]} : vector<8x96xf32> to vector<8x32xf32>
    %170 = arith.mulf %168, %148 : vector<8x32xf32>
    %171 = arith.mulf %167, %166 : vector<8x32xf32>
    %172 = arith.addf %170, %171 : vector<8x32xf32>
    %173 = math.tanh %172 : vector<8x32xf32>
    %174 = arith.mulf %169, %173 : vector<8x32xf32>
    %175 = arith.truncf %174 : vector<8x32xf32> to vector<8x32xbf16>
    %c6 = arith.constant 6 : index
    %c0_37 = arith.constant 0 : index
    %c0_38 = arith.constant 0 : index
    %176 = vector.load %arg11[%c6, %c0_37, %c0_38] : memref<8x8x32xbf16, #tpu.memory_space<vmem>>, vector<1x8x32xbf16>
    %177 = vector.shape_cast %176 : vector<1x8x32xbf16> to vector<8x32xbf16>
    %178 = vector.shape_cast %175 : vector<8x32xbf16> to vector<1x8x32xbf16>
    tpu.vector_store %arg11[%c6, %c0_37, %c0_38], %178 {strides = array<i32>} : memref<8x8x32xbf16, #tpu.memory_space<vmem>>, vector<1x8x32xbf16>,
    %179 = vector.extract_strided_slice %8 {offsets = [7, 0, 0], sizes = [1, 8, 128], strides = [1, 1, 1]} : vector<8x8x128xf32> to vector<1x8x128xf32>
    %180 = vector.shape_cast %179 : vector<1x8x128xf32> to vector<8x128xf32>
    %cst_39 = arith.constant dense<0.000000e+00> : vector<8x128xf32>
    %181 = tpu.matmul %175, %3, %cst_39 {dimension_numbers = #tpu.dot_dimension_numbers<[1], [0], [0], [1], [0, 0, 1, 1], [], []>} : vector<8x32xbf16>, vector<32x128xbf16>, vector<8x128xf32> -> vector<8x128xf32>
    %182 = arith.addf %180, %181 : vector<8x128xf32>
    %183 = vector.extract_strided_slice %182 {offsets = [0, 0], sizes = [8, 96], strides = [1, 1]} : vector<8x128xf32> to vector<8x96xf32>
    %184 = arith.negf %183 : vector<8x96xf32>
    %185 = math.exp %184 : vector<8x96xf32>
    %cst_40 = arith.constant 1.000000e+00 : f32
    %186 = vector.broadcast %cst_40 : f32 to vector<8x96xf32>
    %187 = arith.addf %186, %185 : vector<8x96xf32>
    %188 = arith.divf %186, %187 : vector<8x96xf32>
    %189 = vector.extract_strided_slice %182 {offsets = [0, 96], sizes = [8, 32], strides = [1, 1]} : vector<8x128xf32> to vector<8x32xf32>
    %190 = math.tanh %189 : vector<8x32xf32>
    %191 = vector.extract_strided_slice %188 {offsets = [0, 0], sizes = [8, 32], strides = [1, 1]} : vector<8x96xf32> to vector<8x32xf32>
    %192 = vector.extract_strided_slice %188 {offsets = [0, 32], sizes = [8, 32], strides = [1, 1]} : vector<8x96xf32> to vector<8x32xf32>
    %193 = vector.extract_strided_slice %188 {offsets = [0, 64], sizes = [8, 32], strides = [1, 1]} : vector<8x96xf32> to vector<8x32xf32>
    %194 = arith.mulf %192, %172 : vector<8x32xf32>
    %195 = arith.mulf %191, %190 : vector<8x32xf32>
    %196 = arith.addf %194, %195 : vector<8x32xf32>
    %197 = math.tanh %196 : vector<8x32xf32>
    %198 = arith.mulf %193, %197 : vector<8x32xf32>
    %199 = arith.truncf %198 : vector<8x32xf32> to vector<8x32xbf16>
    %c7 = arith.constant 7 : index
    %c0_41 = arith.constant 0 : index
    %c0_42 = arith.constant 0 : index
    %200 = vector.load %arg11[%c7, %c0_41, %c0_42] : memref<8x8x32xbf16, #tpu.memory_space<vmem>>, vector<1x8x32xbf16>
    %201 = vector.shape_cast %200 : vector<1x8x32xbf16> to vector<8x32xbf16>
    %202 = vector.shape_cast %199 : vector<8x32xbf16> to vector<1x8x32xbf16>
    tpu.vector_store %arg11[%c7, %c0_41, %c0_42], %202 {strides = array<i32>} : memref<8x8x32xbf16, #tpu.memory_space<vmem>>, vector<1x8x32xbf16>,
    %c0_43 = arith.constant 0 : index
    %c0_44 = arith.constant 0 : index
    %c0_45 = arith.constant 0 : index
    %203 = vector.load %arg11[%c0_43, %c0_44, %c0_45] : memref<8x8x32xbf16, #tpu.memory_space<vmem>>, vector<8x8x32xbf16>
    %204 = vector.shape_cast %203 : vector<8x8x32xbf16> to vector<64x32xbf16>
    %c0_46 = arith.constant 0 : index
    %c0_47 = arith.constant 0 : index
    %205 = vector.load %arg5[%c0_46, %c0_47] : memref<32x128xbf16, #tpu.memory_space<vmem>>, vector<32x128xbf16>
    %c0_48 = arith.constant 0 : index
    %c0_49 = arith.constant 0 : index
    %206 = vector.load %arg6[%c0_48, %c0_49] : memref<32x128xbf16, #tpu.memory_space<vmem>>, vector<32x128xbf16>
    %c0_50 = arith.constant 0 : index
    %c0_51 = arith.constant 0 : index
    %207 = vector.load %arg7[%c0_50, %c0_51] : memref<1x128xf32, #tpu.memory_space<vmem>>, vector<1x128xf32>
    %cst_52 = arith.constant dense<0.000000e+00> : vector<64x128xf32>
    %208 = tpu.matmul %204, %205, %cst_52 {dimension_numbers = #tpu.dot_dimension_numbers<[1], [0], [0], [1], [0, 0, 1, 1], [], []>} : vector<64x32xbf16>, vector<32x128xbf16>, vector<64x128xf32> -> vector<64x128xf32>
    %209 = vector.broadcast %207 : vector<1x128xf32> to vector<64x128xf32>
    %210 = arith.addf %208, %209 : vector<64x128xf32>
    %211 = vector.shape_cast %210 : vector<64x128xf32> to vector<8x8x128xf32>
    %cst_53 = arith.constant 0.000000e+00 : bf16
    %212 = vector.broadcast %cst_53 : bf16 to vector<8x32xbf16>
    %cst_54 = arith.constant 0.000000e+00 : f32
    %213 = vector.broadcast %cst_54 : f32 to vector<8x32xf32>
    %214 = vector.extract_strided_slice %211 {offsets = [0, 0, 0], sizes = [1, 8, 128], strides = [1, 1, 1]} : vector<8x8x128xf32> to vector<1x8x128xf32>
    %215 = vector.shape_cast %214 : vector<1x8x128xf32> to vector<8x128xf32>
    %cst_55 = arith.constant dense<0.000000e+00> : vector<8x128xf32>
    %216 = tpu.matmul %212, %206, %cst_55 {dimension_numbers = #tpu.dot_dimension_numbers<[1], [0], [0], [1], [0, 0, 1, 1], [], []>} : vector<8x32xbf16>, vector<32x128xbf16>, vector<8x128xf32> -> vector<8x128xf32>
    %217 = arith.addf %215, %216 : vector<8x128xf32>
    %218 = vector.extract_strided_slice %217 {offsets = [0, 0], sizes = [8, 96], strides = [1, 1]} : vector<8x128xf32> to vector<8x96xf32>
    %219 = arith.negf %218 : vector<8x96xf32>
    %220 = math.exp %219 : vector<8x96xf32>
    %cst_56 = arith.constant 1.000000e+00 : f32
    %221 = vector.broadcast %cst_56 : f32 to vector<8x96xf32>
    %222 = arith.addf %221, %220 : vector<8x96xf32>
    %223 = arith.divf %221, %222 : vector<8x96xf32>
    %224 = vector.extract_strided_slice %217 {offsets = [0, 96], sizes = [8, 32], strides = [1, 1]} : vector<8x128xf32> to vector<8x32xf32>
    %225 = math.tanh %224 : vector<8x32xf32>
    %226 = vector.extract_strided_slice %223 {offsets = [0, 0], sizes = [8, 32], strides = [1, 1]} : vector<8x96xf32> to vector<8x32xf32>
    %227 = vector.extract_strided_slice %223 {offsets = [0, 32], sizes = [8, 32], strides = [1, 1]} : vector<8x96xf32> to vector<8x32xf32>
    %228 = vector.extract_strided_slice %223 {offsets = [0, 64], sizes = [8, 32], strides = [1, 1]} : vector<8x96xf32> to vector<8x32xf32>
    %229 = arith.mulf %227, %213 : vector<8x32xf32>
    %230 = arith.mulf %226, %225 : vector<8x32xf32>
    %231 = arith.addf %229, %230 : vector<8x32xf32>
    %232 = math.tanh %231 : vector<8x32xf32>
    %233 = arith.mulf %228, %232 : vector<8x32xf32>
    %234 = arith.truncf %233 : vector<8x32xf32> to vector<8x32xbf16>
    %c0_57 = arith.constant 0 : index
    %c0_58 = arith.constant 0 : index
    %c0_59 = arith.constant 0 : index
    %235 = vector.load %arg11[%c0_57, %c0_58, %c0_59] : memref<8x8x32xbf16, #tpu.memory_space<vmem>>, vector<1x8x32xbf16>
    %236 = vector.shape_cast %235 : vector<1x8x32xbf16> to vector<8x32xbf16>
    %237 = vector.shape_cast %234 : vector<8x32xbf16> to vector<1x8x32xbf16>
    tpu.vector_store %arg11[%c0_57, %c0_58, %c0_59], %237 {strides = array<i32>} : memref<8x8x32xbf16, #tpu.memory_space<vmem>>, vector<1x8x32xbf16>,
    %238 = vector.extract_strided_slice %211 {offsets = [1, 0, 0], sizes = [1, 8, 128], strides = [1, 1, 1]} : vector<8x8x128xf32> to vector<1x8x128xf32>
    %239 = vector.shape_cast %238 : vector<1x8x128xf32> to vector<8x128xf32>
    %cst_60 = arith.constant dense<0.000000e+00> : vector<8x128xf32>
    %240 = tpu.matmul %234, %206, %cst_60 {dimension_numbers = #tpu.dot_dimension_numbers<[1], [0], [0], [1], [0, 0, 1, 1], [], []>} : vector<8x32xbf16>, vector<32x128xbf16>, vector<8x128xf32> -> vector<8x128xf32>
    %241 = arith.addf %239, %240 : vector<8x128xf32>
    %242 = vector.extract_strided_slice %241 {offsets = [0, 0], sizes = [8, 96], strides = [1, 1]} : vector<8x128xf32> to vector<8x96xf32>
    %243 = arith.negf %242 : vector<8x96xf32>
    %244 = math.exp %243 : vector<8x96xf32>
    %cst_61 = arith.constant 1.000000e+00 : f32
    %245 = vector.broadcast %cst_61 : f32 to vector<8x96xf32>
    %246 = arith.addf %245, %244 : vector<8x96xf32>
    %247 = arith.divf %245, %246 : vector<8x96xf32>
    %248 = vector.extract_strided_slice %241 {offsets = [0, 96], sizes = [8, 32], strides = [1, 1]} : vector<8x128xf32> to vector<8x32xf32>
    %249 = math.tanh %248 : vector<8x32xf32>
    %250 = vector.extract_strided_slice %247 {offsets = [0, 0], sizes = [8, 32], strides = [1, 1]} : vector<8x96xf32> to vector<8x32xf32>
    %251 = vector.extract_strided_slice %247 {offsets = [0, 32], sizes = [8, 32], strides = [1, 1]} : vector<8x96xf32> to vector<8x32xf32>
    %252 = vector.extract_strided_slice %247 {offsets = [0, 64], sizes = [8, 32], strides = [1, 1]} : vector<8x96xf32> to vector<8x32xf32>
    %253 = arith.mulf %251, %231 : vector<8x32xf32>
    %254 = arith.mulf %250, %249 : vector<8x32xf32>
    %255 = arith.addf %253, %254 : vector<8x32xf32>
    %256 = math.tanh %255 : vector<8x32xf32>
    %257 = arith.mulf %252, %256 : vector<8x32xf32>
    %258 = arith.truncf %257 : vector<8x32xf32> to vector<8x32xbf16>
    %c1_62 = arith.constant 1 : index
    %c0_63 = arith.constant 0 : index
    %c0_64 = arith.constant 0 : index
    %259 = vector.load %arg11[%c1_62, %c0_63, %c0_64] : memref<8x8x32xbf16, #tpu.memory_space<vmem>>, vector<1x8x32xbf16>
    %260 = vector.shape_cast %259 : vector<1x8x32xbf16> to vector<8x32xbf16>
    %261 = vector.shape_cast %258 : vector<8x32xbf16> to vector<1x8x32xbf16>
    tpu.vector_store %arg11[%c1_62, %c0_63, %c0_64], %261 {strides = array<i32>} : memref<8x8x32xbf16, #tpu.memory_space<vmem>>, vector<1x8x32xbf16>,
    %262 = vector.extract_strided_slice %211 {offsets = [2, 0, 0], sizes = [1, 8, 128], strides = [1, 1, 1]} : vector<8x8x128xf32> to vector<1x8x128xf32>
    %263 = vector.shape_cast %262 : vector<1x8x128xf32> to vector<8x128xf32>
    %cst_65 = arith.constant dense<0.000000e+00> : vector<8x128xf32>
    %264 = tpu.matmul %258, %206, %cst_65 {dimension_numbers = #tpu.dot_dimension_numbers<[1], [0], [0], [1], [0, 0, 1, 1], [], []>} : vector<8x32xbf16>, vector<32x128xbf16>, vector<8x128xf32> -> vector<8x128xf32>
    %265 = arith.addf %263, %264 : vector<8x128xf32>
    %266 = vector.extract_strided_slice %265 {offsets = [0, 0], sizes = [8, 96], strides = [1, 1]} : vector<8x128xf32> to vector<8x96xf32>
    %267 = arith.negf %266 : vector<8x96xf32>
    %268 = math.exp %267 : vector<8x96xf32>
    %cst_66 = arith.constant 1.000000e+00 : f32
    %269 = vector.broadcast %cst_66 : f32 to vector<8x96xf32>
    %270 = arith.addf %269, %268 : vector<8x96xf32>
    %271 = arith.divf %269, %270 : vector<8x96xf32>
    %272 = vector.extract_strided_slice %265 {offsets = [0, 96], sizes = [8, 32], strides = [1, 1]} : vector<8x128xf32> to vector<8x32xf32>
    %273 = math.tanh %272 : vector<8x32xf32>
    %274 = vector.extract_strided_slice %271 {offsets = [0, 0], sizes = [8, 32], strides = [1, 1]} : vector<8x96xf32> to vector<8x32xf32>
    %275 = vector.extract_strided_slice %271 {offsets = [0, 32], sizes = [8, 32], strides = [1, 1]} : vector<8x96xf32> to vector<8x32xf32>
    %276 = vector.extract_strided_slice %271 {offsets = [0, 64], sizes = [8, 32], strides = [1, 1]} : vector<8x96xf32> to vector<8x32xf32>
    %277 = arith.mulf %275, %255 : vector<8x32xf32>
    %278 = arith.mulf %274, %273 : vector<8x32xf32>
    %279 = arith.addf %277, %278 : vector<8x32xf32>
    %280 = math.tanh %279 : vector<8x32xf32>
    %281 = arith.mulf %276, %280 : vector<8x32xf32>
    %282 = arith.truncf %281 : vector<8x32xf32> to vector<8x32xbf16>
    %c2_67 = arith.constant 2 : index
    %c0_68 = arith.constant 0 : index
    %c0_69 = arith.constant 0 : index
    %283 = vector.load %arg11[%c2_67, %c0_68, %c0_69] : memref<8x8x32xbf16, #tpu.memory_space<vmem>>, vector<1x8x32xbf16>
    %284 = vector.shape_cast %283 : vector<1x8x32xbf16> to vector<8x32xbf16>
    %285 = vector.shape_cast %282 : vector<8x32xbf16> to vector<1x8x32xbf16>
    tpu.vector_store %arg11[%c2_67, %c0_68, %c0_69], %285 {strides = array<i32>} : memref<8x8x32xbf16, #tpu.memory_space<vmem>>, vector<1x8x32xbf16>,
    %286 = vector.extract_strided_slice %211 {offsets = [3, 0, 0], sizes = [1, 8, 128], strides = [1, 1, 1]} : vector<8x8x128xf32> to vector<1x8x128xf32>
    %287 = vector.shape_cast %286 : vector<1x8x128xf32> to vector<8x128xf32>
    %cst_70 = arith.constant dense<0.000000e+00> : vector<8x128xf32>
    %288 = tpu.matmul %282, %206, %cst_70 {dimension_numbers = #tpu.dot_dimension_numbers<[1], [0], [0], [1], [0, 0, 1, 1], [], []>} : vector<8x32xbf16>, vector<32x128xbf16>, vector<8x128xf32> -> vector<8x128xf32>
    %289 = arith.addf %287, %288 : vector<8x128xf32>
    %290 = vector.extract_strided_slice %289 {offsets = [0, 0], sizes = [8, 96], strides = [1, 1]} : vector<8x128xf32> to vector<8x96xf32>
    %291 = arith.negf %290 : vector<8x96xf32>
    %292 = math.exp %291 : vector<8x96xf32>
    %cst_71 = arith.constant 1.000000e+00 : f32
    %293 = vector.broadcast %cst_71 : f32 to vector<8x96xf32>
    %294 = arith.addf %293, %292 : vector<8x96xf32>
    %295 = arith.divf %293, %294 : vector<8x96xf32>
    %296 = vector.extract_strided_slice %289 {offsets = [0, 96], sizes = [8, 32], strides = [1, 1]} : vector<8x128xf32> to vector<8x32xf32>
    %297 = math.tanh %296 : vector<8x32xf32>
    %298 = vector.extract_strided_slice %295 {offsets = [0, 0], sizes = [8, 32], strides = [1, 1]} : vector<8x96xf32> to vector<8x32xf32>
    %299 = vector.extract_strided_slice %295 {offsets = [0, 32], sizes = [8, 32], strides = [1, 1]} : vector<8x96xf32> to vector<8x32xf32>
    %300 = vector.extract_strided_slice %295 {offsets = [0, 64], sizes = [8, 32], strides = [1, 1]} : vector<8x96xf32> to vector<8x32xf32>
    %301 = arith.mulf %299, %279 : vector<8x32xf32>
    %302 = arith.mulf %298, %297 : vector<8x32xf32>
    %303 = arith.addf %301, %302 : vector<8x32xf32>
    %304 = math.tanh %303 : vector<8x32xf32>
    %305 = arith.mulf %300, %304 : vector<8x32xf32>
    %306 = arith.truncf %305 : vector<8x32xf32> to vector<8x32xbf16>
    %c3_72 = arith.constant 3 : index
    %c0_73 = arith.constant 0 : index
    %c0_74 = arith.constant 0 : index
    %307 = vector.load %arg11[%c3_72, %c0_73, %c0_74] : memref<8x8x32xbf16, #tpu.memory_space<vmem>>, vector<1x8x32xbf16>
    %308 = vector.shape_cast %307 : vector<1x8x32xbf16> to vector<8x32xbf16>
    %309 = vector.shape_cast %306 : vector<8x32xbf16> to vector<1x8x32xbf16>
    tpu.vector_store %arg11[%c3_72, %c0_73, %c0_74], %309 {strides = array<i32>} : memref<8x8x32xbf16, #tpu.memory_space<vmem>>, vector<1x8x32xbf16>,
    %310 = vector.extract_strided_slice %211 {offsets = [4, 0, 0], sizes = [1, 8, 128], strides = [1, 1, 1]} : vector<8x8x128xf32> to vector<1x8x128xf32>
    %311 = vector.shape_cast %310 : vector<1x8x128xf32> to vector<8x128xf32>
    %cst_75 = arith.constant dense<0.000000e+00> : vector<8x128xf32>
    %312 = tpu.matmul %306, %206, %cst_75 {dimension_numbers = #tpu.dot_dimension_numbers<[1], [0], [0], [1], [0, 0, 1, 1], [], []>} : vector<8x32xbf16>, vector<32x128xbf16>, vector<8x128xf32> -> vector<8x128xf32>
    %313 = arith.addf %311, %312 : vector<8x128xf32>
    %314 = vector.extract_strided_slice %313 {offsets = [0, 0], sizes = [8, 96], strides = [1, 1]} : vector<8x128xf32> to vector<8x96xf32>
    %315 = arith.negf %314 : vector<8x96xf32>
    %316 = math.exp %315 : vector<8x96xf32>
    %cst_76 = arith.constant 1.000000e+00 : f32
    %317 = vector.broadcast %cst_76 : f32 to vector<8x96xf32>
    %318 = arith.addf %317, %316 : vector<8x96xf32>
    %319 = arith.divf %317, %318 : vector<8x96xf32>
    %320 = vector.extract_strided_slice %313 {offsets = [0, 96], sizes = [8, 32], strides = [1, 1]} : vector<8x128xf32> to vector<8x32xf32>
    %321 = math.tanh %320 : vector<8x32xf32>
    %322 = vector.extract_strided_slice %319 {offsets = [0, 0], sizes = [8, 32], strides = [1, 1]} : vector<8x96xf32> to vector<8x32xf32>
    %323 = vector.extract_strided_slice %319 {offsets = [0, 32], sizes = [8, 32], strides = [1, 1]} : vector<8x96xf32> to vector<8x32xf32>
    %324 = vector.extract_strided_slice %319 {offsets = [0, 64], sizes = [8, 32], strides = [1, 1]} : vector<8x96xf32> to vector<8x32xf32>
    %325 = arith.mulf %323, %303 : vector<8x32xf32>
    %326 = arith.mulf %322, %321 : vector<8x32xf32>
    %327 = arith.addf %325, %326 : vector<8x32xf32>
    %328 = math.tanh %327 : vector<8x32xf32>
    %329 = arith.mulf %324, %328 : vector<8x32xf32>
    %330 = arith.truncf %329 : vector<8x32xf32> to vector<8x32xbf16>
    %c4_77 = arith.constant 4 : index
    %c0_78 = arith.constant 0 : index
    %c0_79 = arith.constant 0 : index
    %331 = vector.load %arg11[%c4_77, %c0_78, %c0_79] : memref<8x8x32xbf16, #tpu.memory_space<vmem>>, vector<1x8x32xbf16>
    %332 = vector.shape_cast %331 : vector<1x8x32xbf16> to vector<8x32xbf16>
    %333 = vector.shape_cast %330 : vector<8x32xbf16> to vector<1x8x32xbf16>
    tpu.vector_store %arg11[%c4_77, %c0_78, %c0_79], %333 {strides = array<i32>} : memref<8x8x32xbf16, #tpu.memory_space<vmem>>, vector<1x8x32xbf16>,
    %334 = vector.extract_strided_slice %211 {offsets = [5, 0, 0], sizes = [1, 8, 128], strides = [1, 1, 1]} : vector<8x8x128xf32> to vector<1x8x128xf32>
    %335 = vector.shape_cast %334 : vector<1x8x128xf32> to vector<8x128xf32>
    %cst_80 = arith.constant dense<0.000000e+00> : vector<8x128xf32>
    %336 = tpu.matmul %330, %206, %cst_80 {dimension_numbers = #tpu.dot_dimension_numbers<[1], [0], [0], [1], [0, 0, 1, 1], [], []>} : vector<8x32xbf16>, vector<32x128xbf16>, vector<8x128xf32> -> vector<8x128xf32>
    %337 = arith.addf %335, %336 : vector<8x128xf32>
    %338 = vector.extract_strided_slice %337 {offsets = [0, 0], sizes = [8, 96], strides = [1, 1]} : vector<8x128xf32> to vector<8x96xf32>
    %339 = arith.negf %338 : vector<8x96xf32>
    %340 = math.exp %339 : vector<8x96xf32>
    %cst_81 = arith.constant 1.000000e+00 : f32
    %341 = vector.broadcast %cst_81 : f32 to vector<8x96xf32>
    %342 = arith.addf %341, %340 : vector<8x96xf32>
    %343 = arith.divf %341, %342 : vector<8x96xf32>
    %344 = vector.extract_strided_slice %337 {offsets = [0, 96], sizes = [8, 32], strides = [1, 1]} : vector<8x128xf32> to vector<8x32xf32>
    %345 = math.tanh %344 : vector<8x32xf32>
    %346 = vector.extract_strided_slice %343 {offsets = [0, 0], sizes = [8, 32], strides = [1, 1]} : vector<8x96xf32> to vector<8x32xf32>
    %347 = vector.extract_strided_slice %343 {offsets = [0, 32], sizes = [8, 32], strides = [1, 1]} : vector<8x96xf32> to vector<8x32xf32>
    %348 = vector.extract_strided_slice %343 {offsets = [0, 64], sizes = [8, 32], strides = [1, 1]} : vector<8x96xf32> to vector<8x32xf32>
    %349 = arith.mulf %347, %327 : vector<8x32xf32>
    %350 = arith.mulf %346, %345 : vector<8x32xf32>
    %351 = arith.addf %349, %350 : vector<8x32xf32>
    %352 = math.tanh %351 : vector<8x32xf32>
    %353 = arith.mulf %348, %352 : vector<8x32xf32>
    %354 = arith.truncf %353 : vector<8x32xf32> to vector<8x32xbf16>
    %c5_82 = arith.constant 5 : index
    %c0_83 = arith.constant 0 : index
    %c0_84 = arith.constant 0 : index
    %355 = vector.load %arg11[%c5_82, %c0_83, %c0_84] : memref<8x8x32xbf16, #tpu.memory_space<vmem>>, vector<1x8x32xbf16>
    %356 = vector.shape_cast %355 : vector<1x8x32xbf16> to vector<8x32xbf16>
    %357 = vector.shape_cast %354 : vector<8x32xbf16> to vector<1x8x32xbf16>
    tpu.vector_store %arg11[%c5_82, %c0_83, %c0_84], %357 {strides = array<i32>} : memref<8x8x32xbf16, #tpu.memory_space<vmem>>, vector<1x8x32xbf16>,
    %358 = vector.extract_strided_slice %211 {offsets = [6, 0, 0], sizes = [1, 8, 128], strides = [1, 1, 1]} : vector<8x8x128xf32> to vector<1x8x128xf32>
    %359 = vector.shape_cast %358 : vector<1x8x128xf32> to vector<8x128xf32>
    %cst_85 = arith.constant dense<0.000000e+00> : vector<8x128xf32>
    %360 = tpu.matmul %354, %206, %cst_85 {dimension_numbers = #tpu.dot_dimension_numbers<[1], [0], [0], [1], [0, 0, 1, 1], [], []>} : vector<8x32xbf16>, vector<32x128xbf16>, vector<8x128xf32> -> vector<8x128xf32>
    %361 = arith.addf %359, %360 : vector<8x128xf32>
    %362 = vector.extract_strided_slice %361 {offsets = [0, 0], sizes = [8, 96], strides = [1, 1]} : vector<8x128xf32> to vector<8x96xf32>
    %363 = arith.negf %362 : vector<8x96xf32>
    %364 = math.exp %363 : vector<8x96xf32>
    %cst_86 = arith.constant 1.000000e+00 : f32
    %365 = vector.broadcast %cst_86 : f32 to vector<8x96xf32>
    %366 = arith.addf %365, %364 : vector<8x96xf32>
    %367 = arith.divf %365, %366 : vector<8x96xf32>
    %368 = vector.extract_strided_slice %361 {offsets = [0, 96], sizes = [8, 32], strides = [1, 1]} : vector<8x128xf32> to vector<8x32xf32>
    %369 = math.tanh %368 : vector<8x32xf32>
    %370 = vector.extract_strided_slice %367 {offsets = [0, 0], sizes = [8, 32], strides = [1, 1]} : vector<8x96xf32> to vector<8x32xf32>
    %371 = vector.extract_strided_slice %367 {offsets = [0, 32], sizes = [8, 32], strides = [1, 1]} : vector<8x96xf32> to vector<8x32xf32>
    %372 = vector.extract_strided_slice %367 {offsets = [0, 64], sizes = [8, 32], strides = [1, 1]} : vector<8x96xf32> to vector<8x32xf32>
    %373 = arith.mulf %371, %351 : vector<8x32xf32>
    %374 = arith.mulf %370, %369 : vector<8x32xf32>
    %375 = arith.addf %373, %374 : vector<8x32xf32>
    %376 = math.tanh %375 : vector<8x32xf32>
    %377 = arith.mulf %372, %376 : vector<8x32xf32>
    %378 = arith.truncf %377 : vector<8x32xf32> to vector<8x32xbf16>
    %c6_87 = arith.constant 6 : index
    %c0_88 = arith.constant 0 : index
    %c0_89 = arith.constant 0 : index
    %379 = vector.load %arg11[%c6_87, %c0_88, %c0_89] : memref<8x8x32xbf16, #tpu.memory_space<vmem>>, vector<1x8x32xbf16>
    %380 = vector.shape_cast %379 : vector<1x8x32xbf16> to vector<8x32xbf16>
    %381 = vector.shape_cast %378 : vector<8x32xbf16> to vector<1x8x32xbf16>
    tpu.vector_store %arg11[%c6_87, %c0_88, %c0_89], %381 {strides = array<i32>} : memref<8x8x32xbf16, #tpu.memory_space<vmem>>, vector<1x8x32xbf16>,
    %382 = vector.extract_strided_slice %211 {offsets = [7, 0, 0], sizes = [1, 8, 128], strides = [1, 1, 1]} : vector<8x8x128xf32> to vector<1x8x128xf32>
    %383 = vector.shape_cast %382 : vector<1x8x128xf32> to vector<8x128xf32>
    %cst_90 = arith.constant dense<0.000000e+00> : vector<8x128xf32>
    %384 = tpu.matmul %378, %206, %cst_90 {dimension_numbers = #tpu.dot_dimension_numbers<[1], [0], [0], [1], [0, 0, 1, 1], [], []>} : vector<8x32xbf16>, vector<32x128xbf16>, vector<8x128xf32> -> vector<8x128xf32>
    %385 = arith.addf %383, %384 : vector<8x128xf32>
    %386 = vector.extract_strided_slice %385 {offsets = [0, 0], sizes = [8, 96], strides = [1, 1]} : vector<8x128xf32> to vector<8x96xf32>
    %387 = arith.negf %386 : vector<8x96xf32>
    %388 = math.exp %387 : vector<8x96xf32>
    %cst_91 = arith.constant 1.000000e+00 : f32
    %389 = vector.broadcast %cst_91 : f32 to vector<8x96xf32>
    %390 = arith.addf %389, %388 : vector<8x96xf32>
    %391 = arith.divf %389, %390 : vector<8x96xf32>
    %392 = vector.extract_strided_slice %385 {offsets = [0, 96], sizes = [8, 32], strides = [1, 1]} : vector<8x128xf32> to vector<8x32xf32>
    %393 = math.tanh %392 : vector<8x32xf32>
    %394 = vector.extract_strided_slice %391 {offsets = [0, 0], sizes = [8, 32], strides = [1, 1]} : vector<8x96xf32> to vector<8x32xf32>
    %395 = vector.extract_strided_slice %391 {offsets = [0, 32], sizes = [8, 32], strides = [1, 1]} : vector<8x96xf32> to vector<8x32xf32>
    %396 = vector.extract_strided_slice %391 {offsets = [0, 64], sizes = [8, 32], strides = [1, 1]} : vector<8x96xf32> to vector<8x32xf32>
    %397 = arith.mulf %395, %375 : vector<8x32xf32>
    %398 = arith.mulf %394, %393 : vector<8x32xf32>
    %399 = arith.addf %397, %398 : vector<8x32xf32>
    %400 = math.tanh %399 : vector<8x32xf32>
    %401 = arith.mulf %396, %400 : vector<8x32xf32>
    %402 = arith.truncf %401 : vector<8x32xf32> to vector<8x32xbf16>
    %c7_92 = arith.constant 7 : index
    %c0_93 = arith.constant 0 : index
    %c0_94 = arith.constant 0 : index
    %403 = vector.load %arg11[%c7_92, %c0_93, %c0_94] : memref<8x8x32xbf16, #tpu.memory_space<vmem>>, vector<1x8x32xbf16>
    %404 = vector.shape_cast %403 : vector<1x8x32xbf16> to vector<8x32xbf16>
    %405 = vector.shape_cast %402 : vector<8x32xbf16> to vector<1x8x32xbf16>
    tpu.vector_store %arg11[%c7_92, %c0_93, %c0_94], %405 {strides = array<i32>} : memref<8x8x32xbf16, #tpu.memory_space<vmem>>, vector<1x8x32xbf16>,
    %c0_95 = arith.constant 0 : index
    %c0_96 = arith.constant 0 : index
    %c0_97 = arith.constant 0 : index
    %406 = vector.load %arg11[%c0_95, %c0_96, %c0_97] : memref<8x8x32xbf16, #tpu.memory_space<vmem>>, vector<8x8x32xbf16>
    %407 = vector.shape_cast %406 : vector<8x8x32xbf16> to vector<64x32xbf16>
    %cst_98 = arith.constant 0.000000e+00 : bf16
    %408 = vector.broadcast %cst_98 : bf16 to vector<64x32xbf16>
    %409 = arith.maximumf %407, %408 : vector<64x32xbf16>
    %c0_99 = arith.constant 0 : index
    %c0_100 = arith.constant 0 : index
    %410 = vector.load %arg8[%c0_99, %c0_100] : memref<32x8xbf16, #tpu.memory_space<vmem>>, vector<32x8xbf16>
    %cst_101 = arith.constant dense<0.000000e+00> : vector<64x8xf32>
    %411 = tpu.matmul %409, %410, %cst_101 {dimension_numbers = #tpu.dot_dimension_numbers<[1], [0], [0], [1], [0, 0, 1, 1], [], []>} : vector<64x32xbf16>, vector<32x8xbf16>, vector<64x8xf32> -> vector<64x8xf32>
    %c0_102 = arith.constant 0 : index
    %c0_103 = arith.constant 0 : index
    %412 = vector.load %arg9[%c0_102, %c0_103] : memref<1x8xf32, #tpu.memory_space<vmem>>, vector<1x8xf32>
    %413 = vector.broadcast %412 : vector<1x8xf32> to vector<64x8xf32>
    %414 = arith.addf %411, %413 : vector<64x8xf32>
    %415 = vector.shape_cast %414 : vector<64x8xf32> to vector<8x8x8xf32>
    %c0_104 = arith.constant 0 : index
    %c0_105 = arith.constant 0 : index
    %c0_106 = arith.constant 0 : index
    %416 = vector.load %arg10[%c0_104, %c0_105, %c0_106] : memref<8x8x8xf32, #tpu.memory_space<vmem>>, vector<8x8x8xf32>
    tpu.vector_store %arg10[%c0_104, %c0_105, %c0_106], %415 {strides = array<i32>} : memref<8x8x8xf32, #tpu.memory_space<vmem>>, vector<8x8x8xf32>,
    return
  }
  func.func @transform_0(%arg0: i32) -> (i32, i32, i32) {
    %c0_i32 = arith.constant 0 : i32
    %c0_i32_0 = arith.constant 0 : i32
    %c0_i32_1 = arith.constant 0 : i32
    return %c0_i32, %arg0, %c0_i32_0 : i32, i32, i32
  }
  func.func @transform_1(%arg0: i32) -> (i32, i32) {
    %c0_i32 = arith.constant 0 : i32
    %c0_i32_0 = arith.constant 0 : i32
    %c0_i32_1 = arith.constant 0 : i32
    return %c0_i32, %c0_i32_0 : i32, i32
  }
  func.func @transform_2(%arg0: i32) -> (i32, i32) {
    %c0_i32 = arith.constant 0 : i32
    %c0_i32_0 = arith.constant 0 : i32
    %c0_i32_1 = arith.constant 0 : i32
    return %c0_i32, %c0_i32_0 : i32, i32
  }
  func.func @transform_3(%arg0: i32) -> (i32, i32) {
    %c0_i32 = arith.constant 0 : i32
    %c0_i32_0 = arith.constant 0 : i32
    %c0_i32_1 = arith.constant 0 : i32
    return %c0_i32, %c0_i32_0 : i32, i32
  }
  func.func @transform_4(%arg0: i32) -> (i32, i32) {
    %c0_i32 = arith.constant 0 : i32
    %c0_i32_0 = arith.constant 0 : i32
    %c0_i32_1 = arith.constant 0 : i32
    return %c0_i32, %c0_i32_0 : i32, i32
  }
  func.func @transform_5(%arg0: i32) -> (i32, i32) {
    %c0_i32 = arith.constant 0 : i32
    %c0_i32_0 = arith.constant 0 : i32
    %c0_i32_1 = arith.constant 0 : i32
    return %c0_i32, %c0_i32_0 : i32, i32
  }
  func.func @transform_6(%arg0: i32) -> (i32, i32) {
    %c0_i32 = arith.constant 0 : i32
    %c0_i32_0 = arith.constant 0 : i32
    %c0_i32_1 = arith.constant 0 : i32
    return %c0_i32, %c0_i32_0 : i32, i32
  }
  func.func @transform_7(%arg0: i32) -> (i32, i32) {
    %c0_i32 = arith.constant 0 : i32
    %c0_i32_0 = arith.constant 0 : i32
    %c0_i32_1 = arith.constant 0 : i32
    return %c0_i32, %c0_i32_0 : i32, i32
  }
  func.func @transform_8(%arg0: i32) -> (i32, i32) {
    %c0_i32 = arith.constant 0 : i32
    %c0_i32_0 = arith.constant 0 : i32
    %c0_i32_1 = arith.constant 0 : i32
    return %c0_i32, %c0_i32_0 : i32, i32
  }
  func.func @transform_9(%arg0: i32) -> (i32, i32, i32) {
    %c0_i32 = arith.constant 0 : i32
    %c0_i32_0 = arith.constant 0 : i32
    %c0_i32_1 = arith.constant 0 : i32
    return %c0_i32, %arg0, %c0_i32_0 : i32, i32, i32
  }
}

</mosaic_0001>

<llo_original>
// kernel: lstm_model_forward.1
$region0: #{lstm_model_forward.1}
  #allocation0 [shape = 'u32[]', space=smem, size = 0x4, offset = 0x4, fixed_abs, tag = 'smem constant byte address 0x4 - core index']
  #allocation1 [shape = 'u32[72,128]{1,0:T(1,128)}', space=vmem, size = 0x9000, scoped, tag = 'internal scratch']
  #allocation2 [shape = 'bf16[8,8,32]{2,1,0:T(8,128)(2,1)}', space=vmem, size = 0x4000, scoped, tag = 'scratch operand']
  %s0 = inlined_call_operand.vmem [shape: bf16[8,16,16], index: 0, kind: input, shape index: {}]
  %s1 = inlined_call_operand.vmem [shape: bf16[16,128], index: 1, kind: input, shape index: {}]
  %s2 = inlined_call_operand.vmem [shape: bf16[32,128], index: 2, kind: input, shape index: {}]
  %s3 = inlined_call_operand.vmem [shape: f32[1,128], index: 3, kind: input, shape index: {}]
  %s4 = inlined_call_operand.vmem [shape: bf16[32,128], index: 4, kind: input, shape index: {}]
  %s5 = inlined_call_operand.vmem [shape: bf16[32,128], index: 5, kind: input, shape index: {}]
  %s6 = inlined_call_operand.vmem [shape: f32[1,128], index: 6, kind: input, shape index: {}]
  %s7 = inlined_call_operand.vmem [shape: bf16[32,8], index: 7, kind: input, shape index: {}]
  %s8 = inlined_call_operand.vmem [shape: f32[1,8], index: 8, kind: input, shape index: {}]
  %s9 = inlined_call_operand.vmem [shape: f32[8,16,8], index: 9, kind: output, shape index: {}]
  %s10 = sld [smem:[#allocation0]]
  $region144: #{lstm_model_forward.1} parent=0
    _
  %s12 = ssub.s32 1, %s10
  %s13 = scalar_select 0, %s12, %s10
  $region1: #{lstm_model_forward.1} parent=0
    #allocation3 [shape = 'u8[32768]{0}', space=vmem, size = 0x8000, scoped, tag = 'input window, operand 0']
    #allocation4 [shape = 'u8[65536]{0}', space=vmem, size = 0x10000, scoped, tag = 'output window, operand 0']
    loop: start=0, step=1, limit=4
    $region2: #{lstm_model_forward.1} parent=1 // loop_pre_header
      _
    $region3: #{lstm_model_forward.1} parent=1 // loop_header
      %s15 = sphi 0, %s19
      %p16 = scmp.ge.s32.totalorder %s15, 4
      %s25 = sphi 0, %s27
      %s28 = sphi 0, %s25
      %s29 = sphi 0, %s28
      %s45 = sphi 0, %s29
      %s49 = sphi 0, %s49
      %s51 = sphi 0, %s49
      %s52 = sphi 0, %s51
      %s66 = sphi 0, %s52
      %s70 = sphi 0, %s70
      %s72 = sphi 0, %s70
      %s73 = sphi 0, %s72
      %s87 = sphi 0, %s73
      %s91 = sphi 0, %s91
      %s93 = sphi 0, %s91
      %s94 = sphi 0, %s93
      %s108 = sphi 0, %s94
      %s112 = sphi 0, %s112
      %s114 = sphi 0, %s112
      %s115 = sphi 0, %s114
      %s129 = sphi 0, %s115
      %s133 = sphi 0, %s133
      %s135 = sphi 0, %s133
      %s136 = sphi 0, %s135
      %s150 = sphi 0, %s136
      %s154 = sphi 0, %s154
      %s156 = sphi 0, %s154
      %s157 = sphi 0, %s156
      %s171 = sphi 0, %s157
      %s175 = sphi 0, %s175
      %s177 = sphi 0, %s175
      %s178 = sphi 0, %s177
      %s192 = sphi 0, %s178
      %s196 = sphi 0, %s196
      %s198 = sphi 0, %s196
      %s199 = sphi 0, %s198
      %s213 = sphi 0, %s199
      %s219 = sphi 0, %s221
      %s222 = sphi 0, %s219
      %s223 = sphi 0, %s222
      %s239 = sphi 0, %s223
    $region4: #{lstm_model_forward.1} parent=1 // loop_header_branch
      %18 = sbr.rel (%p16) target = $region8
    $region5: #{lstm_model_forward.1} parent=1 // loop_body
      %s20 = ssub.s32 %s15, 1
      %s21 = ssub.s32 %s15, 2
      %s22 = sadd.s32 %s15, 1
      %s23 = ssub.s32 %s15, %s22
      %p24 = scmp.eq.s32.totalorder %s23, 0
      %s26 = sadd.s32 %s25, 1
      %s27 = scalar_select %p24, %s25, %s26
      %p30 = pneg %p24
      %p31 = scmp.eq.s32.totalorder %s15, 1
      %p32 = por %p30, %p31
      %p33 = scmp.ne.s32.totalorder %s25, %s28
      %p34 = scmp.eq.s32.totalorder %s15, 0
      %p35 = por %p33, %p34
      %p36 = scmp.ne.s32.totalorder %s25, %s28
      %p37 = scmp.eq.s32.totalorder %s20, 1
      %p38 = por %p36, %p37
      %p39 = scmp.ne.s32.totalorder %s28, %s29
      %p40 = scmp.eq.s32.totalorder %s20, 0
      %p41 = por %p39, %p40
      %p42 = scmp.ne.s32.totalorder %s28, %s29
      %p43 = scmp.eq.s32.totalorder %s21, 1
      %p44 = por %p42, %p43
      %p46 = scmp.ne.s32.totalorder %s29, %s45
      %p47 = scmp.eq.s32.totalorder %s21, 0
      %p48 = por %p46, %p47
      %s50 = sadd.s32 %s49, 1
      %p53 = scmp.eq.s32.totalorder %s15, 1
      %p54 = scmp.ne.s32.totalorder %s49, %s51
      %p55 = scmp.eq.s32.totalorder %s15, 0
      %p56 = por %p54, %p55
      %p57 = scmp.ne.s32.totalorder %s49, %s51
      %p58 = scmp.eq.s32.totalorder %s20, 1
      %p59 = por %p57, %p58
      %p60 = scmp.ne.s32.totalorder %s51, %s52
      %p61 = scmp.eq.s32.totalorder %s20, 0
      %p62 = por %p60, %p61
      %p63 = scmp.ne.s32.totalorder %s51, %s52
      %p64 = scmp.eq.s32.totalorder %s21, 1
      %p65 = por %p63, %p64
      %p67 = scmp.ne.s32.totalorder %s52, %s66
      %p68 = scmp.eq.s32.totalorder %s21, 0
      %p69 = por %p67, %p68
      %s71 = sadd.s32 %s70, 1
      %p74 = scmp.eq.s32.totalorder %s15, 1
      %p75 = scmp.ne.s32.totalorder %s70, %s72
      %p76 = scmp.eq.s32.totalorder %s15, 0
      %p77 = por %p75, %p76
      %p78 = scmp.ne.s32.totalorder %s70, %s72
      %p79 = scmp.eq.s32.totalorder %s20, 1
      %p80 = por %p78, %p79
      %p81 = scmp.ne.s32.totalorder %s72, %s73
      %p82 = scmp.eq.s32.totalorder %s20, 0
      %p83 = por %p81, %p82
      %p84 = scmp.ne.s32.totalorder %s72, %s73
      %p85 = scmp.eq.s32.totalorder %s21, 1
      %p86 = por %p84, %p85
      %p88 = scmp.ne.s32.totalorder %s73, %s87
      %p89 = scmp.eq.s32.totalorder %s21, 0
      %p90 = por %p88, %p89
      %s92 = sadd.s32 %s91, 1
      %p95 = scmp.eq.s32.totalorder %s15, 1
      %p96 = scmp.ne.s32.totalorder %s91, %s93
      %p97 = scmp.eq.s32.totalorder %s15, 0
      %p98 = por %p96, %p97
      %p99 = scmp.ne.s32.totalorder %s91, %s93
      %p100 = scmp.eq.s32.totalorder %s20, 1
      %p101 = por %p99, %p100
      %p102 = scmp.ne.s32.totalorder %s93, %s94
      %p103 = scmp.eq.s32.totalorder %s20, 0
      %p104 = por %p102, %p103
      %p105 = scmp.ne.s32.totalorder %s93, %s94
      %p106 = scmp.eq.s32.totalorder %s21, 1
      %p107 = por %p105, %p106
      %p109 = scmp.ne.s32.totalorder %s94, %s108
      %p110 = scmp.eq.s32.totalorder %s21, 0
      %p111 = por %p109, %p110
      %s113 = sadd.s32 %s112, 1
      %p116 = scmp.eq.s32.totalorder %s15, 1
      %p117 = scmp.ne.s32.totalorder %s112, %s114
      %p118 = scmp.eq.s32.totalorder %s15, 0
      %p119 = por %p117, %p118
      %p120 = scmp.ne.s32.totalorder %s112, %s114
      %p121 = scmp.eq.s32.totalorder %s20, 1
      %p122 = por %p120, %p121
      %p123 = scmp.ne.s32.totalorder %s114, %s115
      %p124 = scmp.eq.s32.totalorder %s20, 0
      %p125 = por %p123, %p124
      %p126 = scmp.ne.s32.totalorder %s114, %s115
      %p127 = scmp.eq.s32.totalorder %s21, 1
      %p128 = por %p126, %p127
      %p130 = scmp.ne.s32.totalorder %s115, %s129
      %p131 = scmp.eq.s32.totalorder %s21, 0
      %p132 = por %p130, %p131
      %s134 = sadd.s32 %s133, 1
      %p137 = scmp.eq.s32.totalorder %s15, 1
      %p138 = scmp.ne.s32.totalorder %s133, %s135
      %p139 = scmp.eq.s32.totalorder %s15, 0
      %p140 = por %p138, %p139
      %p141 = scmp.ne.s32.totalorder %s133, %s135
      %p142 = scmp.eq.s32.totalorder %s20, 1
      %p143 = por %p141, %p142
      %p144 = scmp.ne.s32.totalorder %s135, %s136
      %p145 = scmp.eq.s32.totalorder %s20, 0
      %p146 = por %p144, %p145
      %p147 = scmp.ne.s32.totalorder %s135, %s136
      %p148 = scmp.eq.s32.totalorder %s21, 1
      %p149 = por %p147, %p148
      %p151 = scmp.ne.s32.totalorder %s136, %s150
      %p152 = scmp.eq.s32.totalorder %s21, 0
      %p153 = por %p151, %p152
      %s155 = sadd.s32 %s154, 1
      %p158 = scmp.eq.s32.totalorder %s15, 1
      %p159 = scmp.ne.s32.totalorder %s154, %s156
      %p160 = scmp.eq.s32.totalorder %s15, 0
      %p161 = por %p159, %p160
      %p162 = scmp.ne.s32.totalorder %s154, %s156
      %p163 = scmp.eq.s32.totalorder %s20, 1
      %p164 = por %p162, %p163
      %p165 = scmp.ne.s32.totalorder %s156, %s157
      %p166 = scmp.eq.s32.totalorder %s20, 0
      %p167 = por %p165, %p166
      %p168 = scmp.ne.s32.totalorder %s156, %s157
      %p169 = scmp.eq.s32.totalorder %s21, 1
      %p170 = por %p168, %p169
      %p172 = scmp.ne.s32.totalorder %s157, %s171
      %p173 = scmp.eq.s32.totalorder %s21, 0
      %p174 = por %p172, %p173
      %s176 = sadd.s32 %s175, 1
      %p179 = scmp.eq.s32.totalorder %s15, 1
      %p180 = scmp.ne.s32.totalorder %s175, %s177
      %p181 = scmp.eq.s32.totalorder %s15, 0
      %p182 = por %p180, %p181
      %p183 = scmp.ne.s32.totalorder %s175, %s177
      %p184 = scmp.eq.s32.totalorder %s20, 1
      %p185 = por %p183, %p184
      %p186 = scmp.ne.s32.totalorder %s177, %s178
      %p187 = scmp.eq.s32.totalorder %s20, 0
      %p188 = por %p186, %p187
      %p189 = scmp.ne.s32.totalorder %s177, %s178
      %p190 = scmp.eq.s32.totalorder %s21, 1
      %p191 = por %p189, %p190
      %p193 = scmp.ne.s32.totalorder %s178, %s192
      %p194 = scmp.eq.s32.totalorder %s21, 0
      %p195 = por %p193, %p194
      %s197 = sadd.s32 %s196, 1
      %p200 = scmp.eq.s32.totalorder %s15, 1
      %p201 = scmp.ne.s32.totalorder %s196, %s198
      %p202 = scmp.eq.s32.totalorder %s15, 0
      %p203 = por %p201, %p202
      %p204 = scmp.ne.s32.totalorder %s196, %s198
      %p205 = scmp.eq.s32.totalorder %s20, 1
      %p206 = por %p204, %p205
      %p207 = scmp.ne.s32.totalorder %s198, %s199
      %p208 = scmp.eq.s32.totalorder %s20, 0
      %p209 = por %p207, %p208
      %p210 = scmp.ne.s32.totalorder %s198, %s199
      %p211 = scmp.eq.s32.totalorder %s21, 1
      %p212 = por %p210, %p211
      %p214 = scmp.ne.s32.totalorder %s199, %s213
      %p215 = scmp.eq.s32.totalorder %s21, 0
      %p216 = por %p214, %p215
      %s217 = ssub.s32 %s15, %s22
      %p218 = scmp.eq.s32.totalorder %s217, 0
      %s220 = sadd.s32 %s219, 1
      %s221 = scalar_select %p218, %s219, %s220
      %p224 = pneg %p218
      %p225 = scmp.eq.s32.totalorder %s15, 1
      %p226 = por %p224, %p225
      %p227 = scmp.ne.s32.totalorder %s219, %s222
      %p228 = scmp.eq.s32.totalorder %s15, 0
      %p229 = por %p227, %p228
      %p230 = scmp.ne.s32.totalorder %s219, %s222
      %p231 = scmp.eq.s32.totalorder %s20, 1
      %p232 = por %p230, %p231
      %p233 = scmp.ne.s32.totalorder %s222, %s223
      %p234 = scmp.eq.s32.totalorder %s20, 0
      %p235 = por %p233, %p234
      %p236 = scmp.ne.s32.totalorder %s222, %s223
      %p237 = scmp.eq.s32.totalorder %s21, 1
      %p238 = por %p236, %p237
      %p240 = scmp.ne.s32.totalorder %s223, %s239
      %p241 = scmp.eq.s32.totalorder %s21, 0
      %p242 = por %p240, %p241
      %p243 = scmp.le.s32.totalorder 1, %s15
      %p244 = scmp.lt.s32.totalorder %s15, 3
      %p245 = pnand %p243, %p244
      %p246 = pneg %p245
      // Predicated region
      $region9: #{lstm_model_forward.1} parent=5 // pred_check
        _
      $region10: #{lstm_model_forward.1} parent=5 // pred_check_branch
        %248 = sbr.rel (%p245) target = $region12
      $region11: #{lstm_model_forward.1} parent=5 // pred_region
        %s249 = ssub.s32 %s15, 1
        // Predicated region
        $region13: #{lstm_model_forward.1} parent=11 // pred_check
          %p250 = pneg %p62
        $region14: #{lstm_model_forward.1} parent=11 // pred_check_branch
          %252 = sbr.rel (%p250) target = $region16
        $region15: #{lstm_model_forward.1} parent=11 // pred_region
          _
        $region16: #{lstm_model_forward.1} parent=11 // pred_fallthru
          _
        // Predicated region
        $region17: #{lstm_model_forward.1} parent=11 // pred_check
          %p253 = pneg %p83
        $region18: #{lstm_model_forward.1} parent=11 // pred_check_branch
          %255 = sbr.rel (%p253) target = $region20
        $region19: #{lstm_model_forward.1} parent=11 // pred_region
          _
        $region20: #{lstm_model_forward.1} parent=11 // pred_fallthru
          _
        // Predicated region
        $region21: #{lstm_model_forward.1} parent=11 // pred_check
          %p256 = pneg %p104
        $region22: #{lstm_model_forward.1} parent=11 // pred_check_branch
          %258 = sbr.rel (%p256) target = $region24
        $region23: #{lstm_model_forward.1} parent=11 // pred_region
          _
        $region24: #{lstm_model_forward.1} parent=11 // pred_fallthru
          _
        // Predicated region
        $region25: #{lstm_model_forward.1} parent=11 // pred_check
          %p259 = pneg %p125
        $region26: #{lstm_model_forward.1} parent=11 // pred_check_branch
          %261 = sbr.rel (%p259) target = $region28
        $region27: #{lstm_model_forward.1} parent=11 // pred_region
          _
        $region28: #{lstm_model_forward.1} parent=11 // pred_fallthru
          _
        // Predicated region
        $region29: #{lstm_model_forward.1} parent=11 // pred_check
          %p262 = pneg %p146
        $region30: #{lstm_model_forward.1} parent=11 // pred_check_branch
          %264 = sbr.rel (%p262) target = $region32
        $region31: #{lstm_model_forward.1} parent=11 // pred_region
          _
        $region32: #{lstm_model_forward.1} parent=11 // pred_fallthru
          _
        // Predicated region
        $region33: #{lstm_model_forward.1} parent=11 // pred_check
          %p265 = pneg %p167
        $region34: #{lstm_model_forward.1} parent=11 // pred_check_branch
          %267 = sbr.rel (%p265) target = $region36
        $region35: #{lstm_model_forward.1} parent=11 // pred_region
          _
        $region36: #{lstm_model_forward.1} parent=11 // pred_fallthru
          _
        // Predicated region
        $region37: #{lstm_model_forward.1} parent=11 // pred_check
          %p268 = pneg %p188
        $region38: #{lstm_model_forward.1} parent=11 // pred_check_branch
          %270 = sbr.rel (%p268) target = $region40
        $region39: #{lstm_model_forward.1} parent=11 // pred_region
          _
        $region40: #{lstm_model_forward.1} parent=11 // pred_fallthru
          _
        // Predicated region
        $region41: #{lstm_model_forward.1} parent=11 // pred_check
          %p271 = pneg %p209
        $region42: #{lstm_model_forward.1} parent=11 // pred_check_branch
          %273 = sbr.rel (%p271) target = $region44
        $region43: #{lstm_model_forward.1} parent=11 // pred_region
          _
        $region44: #{lstm_model_forward.1} parent=11 // pred_fallthru
          _
      $region12: #{lstm_model_forward.1} parent=5 // pred_fallthru
        _
      %p274 = scmp.lt.s32.totalorder %s15, 2
      // Predicated region
      $region45: #{lstm_model_forward.1} parent=5 // pred_check
        %p275 = pneg %p274
      $region46: #{lstm_model_forward.1} parent=5 // pred_check_branch
        %277 = sbr.rel (%p275) target = $region48
      $region47: #{lstm_model_forward.1} parent=5 // pred_region
        // Predicated region
        $region49: #{lstm_model_forward.1} parent=47 // pred_check
          %p278 = pneg %p35
        $region50: #{lstm_model_forward.1} parent=47 // pred_check_branch
          %280 = sbr.rel (%p278) target = $region52
        $region51: #{lstm_model_forward.1} parent=47 // pred_region
          %s281 = sand.u32 %s25, 1
          %s282 = sand.u32 %s25, 1
          %s283 = smul.addr %s282, 32
          %s284 = scalar_lea.vmem [#allocation3], %s283
          %s285 = smul.addr %s15, 4
          %s286 = scalar_lea.vmem %s0, %s285
          // Predicated region
          $region53: #{lstm_model_forward.1} parent=51 // pred_check
            _
          $region54: #{lstm_model_forward.1} parent=51 // pred_check_branch
            %288 = sbr.rel (0) target = $region56
          $region55: #{lstm_model_forward.1} parent=51 // pred_region
            // Predicated region
            $region57: #{lstm_model_forward.1} parent=55 // pred_check
              _
            $region58: #{lstm_model_forward.1} parent=55 // pred_check_branch
              %290 = sbr.rel target = $region60
            $region59: #{lstm_model_forward.1} parent=55 // pred_region
              // Predicated region
              $region72: #{lstm_model_forward.1} parent=59 // pred_check
                _
              $region73: #{lstm_model_forward.1} parent=59 // pred_check_branch
                %320 = sbr.rel (0) target = $region75
              $region74: #{lstm_model_forward.1} parent=59 // pred_region
                loop: start=0, step=1, limit=1
                $region76: #{lstm_model_forward.1} parent=74 // loop_pre_header
                  _
                $region77: #{lstm_model_forward.1} parent=74 // loop_header
                  %s322 = sphi 0, %s326
                  %p323 = scmp.ge.s32.totalorder %s322, 1
                  %s327 = sphi %s286, %s286
                  %s328 = sphi %s284, %s284
                $region78: #{lstm_model_forward.1} parent=74 // loop_header_branch
                  %325 = sbr.rel (%p323) target = $region82
                $region79: #{lstm_model_forward.1} parent=74 // loop_body
                  _
                $region80: #{lstm_model_forward.1} parent=74 // loop_footer
                  %s326 = sadd.s32 1, %s322
                $region81: #{lstm_model_forward.1} parent=74 // loop_footer_branch
                  %321 = sbr.rel target = $region77
                $region82: #{lstm_model_forward.1} parent=74 // loop_exit
                  _
                %s330 = ssub.s32 16, 1
                loop: start=0, step=1, limit=1
                $region83: #{lstm_model_forward.1} parent=74 // loop_pre_header
                  _
                $region84: #{lstm_model_forward.1} parent=74 // loop_header
                  %s332 = sphi 0, %s336
                  %p333 = scmp.ge.s32.totalorder %s332, 1
                  %s337 = sphi %s286, %s286
                  %s338 = sphi %s284, %s284
                $region85: #{lstm_model_forward.1} parent=74 // loop_header_branch
                  %335 = sbr.rel (%p333) target = $region89
                $region86: #{lstm_model_forward.1} parent=74 // loop_body
                  %v339 = vld [vmem:[%s337] sm:%s330]
                  %340 = vst [vmem:[%s338] sm:%s330] %v339
                  %v341 = vld [vmem:[%s337 + $0x8] sm:%s330]
                  %342 = vst [vmem:[%s338 + $0x4] sm:%s330] %v341
                  %v343 = vld [vmem:[%s337 + $0x10] sm:%s330]
                  %344 = vst [vmem:[%s338 + $0x8] sm:%s330] %v343
                  %v345 = vld [vmem:[%s337 + $0x18] sm:%s330]
                  %346 = vst [vmem:[%s338 + $0xc] sm:%s330] %v345
                  %v347 = vld [vmem:[%s337 + $0x20] sm:%s330]
                  %348 = vst [vmem:[%s338 + $0x10] sm:%s330] %v347
                  %v349 = vld [vmem:[%s337 + $0x28] sm:%s330]
                  %350 = vst [vmem:[%s338 + $0x14] sm:%s330] %v349
                  %v351 = vld [vmem:[%s337 + $0x30] sm:%s330]
                  %352 = vst [vmem:[%s338 + $0x18] sm:%s330] %v351
                  %v353 = vld [vmem:[%s337 + $0x38] sm:%s330]
                  %354 = vst [vmem:[%s338 + $0x1c] sm:%s330] %v353
                $region87: #{lstm_model_forward.1} parent=74 // loop_footer
                  %s336 = sadd.s32 1, %s332
                $region88: #{lstm_model_forward.1} parent=74 // loop_footer_branch
                  %331 = sbr.rel target = $region84
                $region89: #{lstm_model_forward.1} parent=74 // loop_exit
                  _
              $region75: #{lstm_model_forward.1} parent=59 // pred_fallthru
                _
            $region60: #{lstm_model_forward.1} parent=55 // pred_fallthru
              _
            // Predicated region
            $region61: #{lstm_model_forward.1} parent=55 // pred_check
              _
            $region62: #{lstm_model_forward.1} parent=55 // pred_check_branch
              %292 = sbr.rel (0) target = $region64
            $region63: #{lstm_model_forward.1} parent=55 // pred_region
              %s294 = ssub.s32 16, 1
              loop: start=0, step=1, limit=1
              $region65: #{lstm_model_forward.1} parent=63 // loop_pre_header
                _
              $region66: #{lstm_model_forward.1} parent=63 // loop_header
                %s296 = sphi 0, %s300
                %p297 = scmp.ge.s32.totalorder %s296, 1
                %s301 = sphi %s286, %s286
                %s302 = sphi %s284, %s284
              $region67: #{lstm_model_forward.1} parent=63 // loop_header_branch
                %299 = sbr.rel (%p297) target = $region71
              $region68: #{lstm_model_forward.1} parent=63 // loop_body
                %v303 = vld [vmem:[%s301] sm:%s294]
                %304 = vst [vmem:[%s302] sm:%s294] %v303
                %v305 = vld [vmem:[%s301 + $0x8] sm:%s294]
                %306 = vst [vmem:[%s302 + $0x4] sm:%s294] %v305
                %v307 = vld [vmem:[%s301 + $0x10] sm:%s294]
                %308 = vst [vmem:[%s302 + $0x8] sm:%s294] %v307
                %v309 = vld [vmem:[%s301 + $0x18] sm:%s294]
                %310 = vst [vmem:[%s302 + $0xc] sm:%s294] %v309
                %v311 = vld [vmem:[%s301 + $0x20] sm:%s294]
                %312 = vst [vmem:[%s302 + $0x10] sm:%s294] %v311
                %v313 = vld [vmem:[%s301 + $0x28] sm:%s294]
                %314 = vst [vmem:[%s302 + $0x14] sm:%s294] %v313
                %v315 = vld [vmem:[%s301 + $0x30] sm:%s294]
                %316 = vst [vmem:[%s302 + $0x18] sm:%s294] %v315
                %v317 = vld [vmem:[%s301 + $0x38] sm:%s294]
                %318 = vst [vmem:[%s302 + $0x1c] sm:%s294] %v317
              $region69: #{lstm_model_forward.1} parent=63 // loop_footer
                %s300 = sadd.s32 1, %s296
              $region70: #{lstm_model_forward.1} parent=63 // loop_footer_branch
                %295 = sbr.rel target = $region66
              $region71: #{lstm_model_forward.1} parent=63 // loop_exit
                _
            $region64: #{lstm_model_forward.1} parent=55 // pred_fallthru
              _
          $region56: #{lstm_model_forward.1} parent=51 // pred_fallthru
            _
          %355 = vnop
        $region52: #{lstm_model_forward.1} parent=47 // pred_fallthru
          _
      $region48: #{lstm_model_forward.1} parent=5 // pred_fallthru
        _
      %p356 = scmp.le.s32.totalorder 1, %s15
      %p357 = scmp.lt.s32.totalorder %s15, 3
      %p358 = pnand %p356, %p357
      %p359 = pneg %p358
      // Predicated region
      $region90: #{lstm_model_forward.1} parent=5 // pred_check
        _
      $region91: #{lstm_model_forward.1} parent=5 // pred_check_branch
        %361 = sbr.rel (%p358) target = $region93
      $region92: #{lstm_model_forward.1} parent=5 // pred_region
        %s362 = ssub.s32 %s15, 1
        %s363 = sand.u32 %s28, 1
        %s364 = sand.u32 %s28, 1
        %s365 = smul.addr %s364, 32
        %s366 = scalar_lea.vmem [#allocation3], %s365
        // Predicated region
        $region94: #{lstm_model_forward.1} parent=92 // pred_check
          %p367 = pneg %p41
        $region95: #{lstm_model_forward.1} parent=92 // pred_check_branch
          %369 = sbr.rel (%p367) target = $region97
        $region96: #{lstm_model_forward.1} parent=92 // pred_region
          _
        $region97: #{lstm_model_forward.1} parent=92 // pred_fallthru
          _
        %s370 = sand.u32 %s28, 1
        %s371 = sand.u32 %s28, 1
        %s372 = smul.addr %s371, 32
        %s373 = scalar_lea.vmem [#allocation3], %s372
        %p374 = pneg %p41
        %p375 = pneg %p38
        %p376 = pneg %p62
        %p377 = pneg %p59
        %p378 = pneg %p83
        %p379 = pneg %p80
        %p380 = pneg %p104
        %p381 = pneg %p101
        %p382 = pneg %p125
        %p383 = pneg %p122
        %p384 = pneg %p146
        %p385 = pneg %p143
        %p386 = pneg %p167
        %p387 = pneg %p164
        %p388 = pneg %p188
        %p389 = pneg %p185
        %p390 = pneg %p209
        %p391 = pneg %p206
        %p392 = pneg %p235
        %p393 = pneg %p232
        %s394 = sand.u32 %s222, 1
        %s395 = sand.u32 %s222, 1
        %s396 = smul.addr %s395, 64
        %s397 = scalar_lea.vmem [#allocation4], %s396
        %v399 = vld [vmem:[%s366] sm:$0xf]
        %v400 = vld [vmem:[%s366 + $0x4] sm:$0xf]
        %v401 = vld [vmem:[%s366 + $0x8] sm:$0xf]
        %v402 = vld [vmem:[%s366 + $0xc] sm:$0xf]
        %v403 = vld [vmem:[%s366 + $0x10] sm:$0xf]
        %v404 = vld [vmem:[%s366 + $0x14] sm:$0xf]
        %v405 = vld [vmem:[%s366 + $0x18] sm:$0xf]
        %v406 = vld [vmem:[%s366 + $0x1c] sm:$0xf]
        %v407 = vld [vmem:[%s1] sm:$0xf]
        %v408 = vld [vmem:[%s1 + $0x4] sm:$0xf]
        %v409 = vld [vmem:[%s2] sm:$0xf]
        %v410 = vld [vmem:[%s2 + $0x4] sm:$0xf]
        %v411 = vld [vmem:[%s2 + $0x8] sm:$0xf]
        %v412 = vld [vmem:[%s2 + $0xc] sm:$0xf]
        %v413 = vld [vmem:[%s3] sm:$0x1]
        %v415 = vperm.slane %v413, 0
        %v425 = vunpack.c.l.b16 %v399
        %v426 = vunpack.c.l.b16 %v400
        %v427 = vunpack.c.l.b16 %v401
        %v428 = vunpack.c.l.b16 %v402
        %v429 = vunpack.c.l.b16 %v403
        %v430 = vunpack.c.l.b16 %v404
        %v431 = vunpack.c.l.b16 %v405
        %v432 = vunpack.c.l.b16 %v406
        %v433 = vpack.c.b16 %v426, %v425
        %v434 = vpack.c.b16 %v428, %v427
        %v435 = vpack.c.b16 %v430, %v429
        %v436 = vpack.c.b16 %v432, %v431
        %v439 = vunpack.c.l.b16 %v407
        %v440 = vunpack.c.l.b16 %v408
        %v441 = vpack.c.b16 %v440, %v439
        %vm443 = vcmask 130048
        %v445 = vsel %vm443, %v433, 0
        %v448 = vsel %vm443, %v434, 0
        %v451 = vsel %vm443, %v435, 0
        %v454 = vsel %vm443, %v436, 0
        %456 = vmatpush.bf16.msra.mxu0 0
        %457 = vmatpush.bf16.msra.mxu0 0
        %458 = vmatpush.bf16.msra.mxu0 0
        %459 = vmatpush.bf16.msra.mxu0 0
        %460 = vmatpush.bf16.msra.mxu0 0
        %461 = vmatpush.bf16.msra.mxu0 0
        %462 = vmatpush.bf16.msra.mxu0 0
        %463 = vmatpush.bf16.msra.mxu0 %v441
        %464 = vmatmul.bf16.gmra.mxu0 %v445
        %v465 = vpop.f32.mrf.mxu0
        %v466 = vadd.f32 %v415, %v465
        %v467 = vpop.f32.mrf.mxu0
        %v468 = vadd.f32 %v415, %v467
        %469 = vmatmul.bf16.gmra.mxu0 %v448
        %v470 = vpop.f32.mrf.mxu0
        %v471 = vadd.f32 %v415, %v470
        %v472 = vpop.f32.mrf.mxu0
        %v473 = vadd.f32 %v415, %v472
        %474 = vmatmul.bf16.gmra.mxu0 %v451
        %v475 = vpop.f32.mrf.mxu0
        %v476 = vadd.f32 %v415, %v475
        %v477 = vpop.f32.mrf.mxu0
        %v478 = vadd.f32 %v415, %v477
        %479 = vmatmul.bf16.gmra.mxu0 %v454
        %v480 = vpop.f32.mrf.mxu0
        %v481 = vadd.f32 %v415, %v480
        %v482 = vpop.f32.mrf.mxu0
        %v483 = vadd.f32 %v415, %v482
        %484 = vdwg.mxu0
        %v489 = vunpack.c.l.b16 %v409
        %v490 = vunpack.c.l.b16 %v410
        %v491 = vunpack.c.l.b16 %v411
        %v492 = vunpack.c.l.b16 %v412
        %v493 = vpack.c.b16 %v490, %v489
        %v494 = vpack.c.b16 %v492, %v491
        %vm497 = vcmask 261120
        %v499 = vsel %vm497, 0, 0
        %501 = vmatpush.bf16.msra.mxu0 0
        %502 = vmatpush.bf16.msra.mxu0 0
        %503 = vmatpush.bf16.msra.mxu0 0
        %504 = vmatpush.bf16.msra.mxu0 0
        %505 = vmatpush.bf16.msra.mxu0 0
        %506 = vmatpush.bf16.msra.mxu0 0
        %507 = vmatpush.bf16.msra.mxu0 %v494
        %508 = vmatpush.bf16.msra.mxu0 %v493
        %509 = vmatmul.bf16.gmra.mxu0 %v499
        %v510 = vpop.f32.mrf.mxu0
        %v511 = vadd.f32 0.0, %v510
        %v512 = vpop.f32.mrf.mxu0
        %513 = vdwg.mxu0
        %v514 = vadd.f32 %v466, %v511
        %v515 = vxor.u32 %v514, 2147483648
        %v516 = vmul.f32 %v515, 1.442695
        %v517 = vpow.pop %v516
        %v518 = vadd.f32 %v517, 1.0
        %v519 = vrcp.pop %v518
        %v520 = vmul.f32 %v518, %v519
        %v521 = vsub.f32 1.0, %v520
        %v522 = vmul.f32 %v519, %v521
        %v523 = vadd.f32 %v519, %v522
        %vm524 = vweird.f32 %v518
        %vm525 = vweird.f32 %v519
        %vm526 = vmor %vm524, %vm525
        %v527 = vsel %vm526, %v519, %v523
        %v528 = vand.u32 2147483647, %v518
        %vm529 = vcmp.eq.f32.partialorder %v528, 8.507059e+37
        %v530 = vand.u32 %v518, 2147483648
        %v531 = vor.u32 1.1754944e-38, %v530
        %v532 = vsel %vm529, %v531, %v527
        %v533 = vmul.f32 1.0, %v532
        %v534 = vtanh.pop %v514
        %v535 = vmul.f32 %v533, 0.0
        %537 = vrot.lane.b32.xlu0 %v534, 32
        %v538 = vpop.permute.xlu0 %537
        %v540 = vmul.f32 %v533, %v538
        %542 = vrot.lane.b32.xlu0 %v540, 32
        %v543 = vpop.permute.xlu0 %542
        %v545 = vadd.f32 %v535, %v543
        %v546 = vtanh.pop %v545
        %548 = vrot.lane.b32.xlu0 %v546, 32
        %v549 = vpop.permute.xlu0 %548
        %v551 = vmul.f32 %v533, %v549
        %v552 = vpack.c.bf16 %v551, %v551
        %554 = vrot.lane.b32.xlu0 %v552, 64
        %v555 = vpop.permute.xlu0 %554
        %vm557 = vcmask 257024
        %558 = vst.msk [vmem:[#allocation2] sm:$0xf] %vm557, %v555
        %v559 = vunpack.c.l.b16 %v552
        %v560 = vpack.c.b16 %v559, %v559
        %561 = vrot.lane.b32.xlu0 %v560, 64
        %v562 = vpop.permute.xlu0 %561
        %v564 = vsel %vm497, %v562, 0
        %566 = vmatpush.bf16.msra.mxu0 0
        %567 = vmatpush.bf16.msra.mxu0 0
        %568 = vmatpush.bf16.msra.mxu0 0
        %569 = vmatpush.bf16.msra.mxu0 0
        %570 = vmatpush.bf16.msra.mxu0 0
        %571 = vmatpush.bf16.msra.mxu0 0
        %572 = vmatpush.bf16.msra.mxu0 %v494
        %573 = vmatpush.bf16.msra.mxu0 %v493
        %574 = vmatmul.bf16.gmra.mxu0 %v564
        %v575 = vpop.f32.mrf.mxu0
        %v576 = vadd.f32 0.0, %v575
        %v577 = vpop.f32.mrf.mxu0
        %578 = vdwg.mxu0
        %v579 = vadd.f32 %v468, %v576
        %v580 = vxor.u32 %v579, 2147483648
        %v581 = vmul.f32 %v580, 1.442695
        %v582 = vpow.pop %v581
        %v583 = vadd.f32 %v582, 1.0
        %v584 = vrcp.pop %v583
        %v585 = vmul.f32 %v583, %v584
        %v586 = vsub.f32 1.0, %v585
        %v587 = vmul.f32 %v584, %v586
        %v588 = vadd.f32 %v584, %v587
        %vm589 = vweird.f32 %v583
        %vm590 = vweird.f32 %v584
        %vm591 = vmor %vm589, %vm590
        %v592 = vsel %vm591, %v584, %v588
        %v593 = vand.u32 2147483647, %v583
        %vm594 = vcmp.eq.f32.partialorder %v593, 8.507059e+37
        %v595 = vand.u32 %v583, 2147483648
        %v596 = vor.u32 1.1754944e-38, %v595
        %v597 = vsel %vm594, %v596, %v592
        %v598 = vmul.f32 1.0, %v597
        %v599 = vtanh.pop %v579
        %v600 = vmul.f32 %v598, %v545
        %602 = vrot.lane.b32.xlu0 %v599, 32
        %v603 = vpop.permute.xlu0 %602
        %v605 = vmul.f32 %v598, %v603
        %607 = vrot.lane.b32.xlu0 %v605, 32
        %v608 = vpop.permute.xlu0 %607
        %v610 = vadd.f32 %v600, %v608
        %v611 = vtanh.pop %v610
        %613 = vrot.lane.b32.xlu0 %v611, 32
        %v614 = vpop.permute.xlu0 %613
        %v616 = vmul.f32 %v598, %v614
        %v617 = vpack.c.bf16 %v616, %v616
        %619 = vrot.lane.b32.xlu0 %v617, 64
        %v620 = vpop.permute.xlu0 %619
        %s622 = scalar_lea.vmem [#allocation2], 4
        %623 = vst.msk [vmem:[%s622] sm:$0xf] %vm557, %v620
        %v624 = vunpack.c.l.b16 %v617
        %v625 = vpack.c.b16 %v624, %v624
        %626 = vrot.lane.b32.xlu0 %v625, 64
        %v627 = vpop.permute.xlu0 %626
        %v629 = vsel %vm497, %v627, 0
        %631 = vmatpush.bf16.msra.mxu0 0
        %632 = vmatpush.bf16.msra.mxu0 0
        %633 = vmatpush.bf16.msra.mxu0 0
        %634 = vmatpush.bf16.msra.mxu0 0
        %635 = vmatpush.bf16.msra.mxu0 0
        %636 = vmatpush.bf16.msra.mxu0 0
        %637 = vmatpush.bf16.msra.mxu0 %v494
        %638 = vmatpush.bf16.msra.mxu0 %v493
        %639 = vmatmul.bf16.gmra.mxu0 %v629
        %v640 = vpop.f32.mrf.mxu0
        %v641 = vadd.f32 0.0, %v640
        %v642 = vpop.f32.mrf.mxu0
        %643 = vdwg.mxu0
        %v644 = vadd.f32 %v471, %v641
        %v645 = vxor.u32 %v644, 2147483648
        %v646 = vmul.f32 %v645, 1.442695
        %v647 = vpow.pop %v646
        %v648 = vadd.f32 %v647, 1.0
        %v649 = vrcp.pop %v648
        %v650 = vmul.f32 %v648, %v649
        %v651 = vsub.f32 1.0, %v650
        %v652 = vmul.f32 %v649, %v651
        %v653 = vadd.f32 %v649, %v652
        %vm654 = vweird.f32 %v648
        %vm655 = vweird.f32 %v649
        %vm656 = vmor %vm654, %vm655
        %v657 = vsel %vm656, %v649, %v653
        %v658 = vand.u32 2147483647, %v648
        %vm659 = vcmp.eq.f32.partialorder %v658, 8.507059e+37
        %v660 = vand.u32 %v648, 2147483648
        %v661 = vor.u32 1.1754944e-38, %v660
        %v662 = vsel %vm659, %v661, %v657
        %v663 = vmul.f32 1.0, %v662
        %v664 = vtanh.pop %v644
        %v665 = vmul.f32 %v663, %v610
        %667 = vrot.lane.b32.xlu0 %v664, 32
        %v668 = vpop.permute.xlu0 %667
        %v670 = vmul.f32 %v663, %v668
        %672 = vrot.lane.b32.xlu0 %v670, 32
        %v673 = vpop.permute.xlu0 %672
        %v675 = vadd.f32 %v665, %v673
        %v676 = vtanh.pop %v675
        %678 = vrot.lane.b32.xlu0 %v676, 32
        %v679 = vpop.permute.xlu0 %678
        %v681 = vmul.f32 %v663, %v679
        %v682 = vpack.c.bf16 %v681, %v681
        %684 = vrot.lane.b32.xlu0 %v682, 64
        %v685 = vpop.permute.xlu0 %684
        %s687 = scalar_lea.vmem [#allocation2], 8
        %688 = vst.msk [vmem:[%s687] sm:$0xf] %vm557, %v685
        %v689 = vunpack.c.l.b16 %v682
        %v690 = vpack.c.b16 %v689, %v689
        %691 = vrot.lane.b32.xlu0 %v690, 64
        %v692 = vpop.permute.xlu0 %691
        %v694 = vsel %vm497, %v692, 0
        %696 = vmatpush.bf16.msra.mxu0 0
        %697 = vmatpush.bf16.msra.mxu0 0
        %698 = vmatpush.bf16.msra.mxu0 0
        %699 = vmatpush.bf16.msra.mxu0 0
        %700 = vmatpush.bf16.msra.mxu0 0
        %701 = vmatpush.bf16.msra.mxu0 0
        %702 = vmatpush.bf16.msra.mxu0 %v494
        %703 = vmatpush.bf16.msra.mxu0 %v493
        %704 = vmatmul.bf16.gmra.mxu0 %v694
        %v705 = vpop.f32.mrf.mxu0
        %v706 = vadd.f32 0.0, %v705
        %v707 = vpop.f32.mrf.mxu0
        %708 = vdwg.mxu0
        %v709 = vadd.f32 %v473, %v706
        %v710 = vxor.u32 %v709, 2147483648
        %v711 = vmul.f32 %v710, 1.442695
        %v712 = vpow.pop %v711
        %v713 = vadd.f32 %v712, 1.0
        %v714 = vrcp.pop %v713
        %v715 = vmul.f32 %v713, %v714
        %v716 = vsub.f32 1.0, %v715
        %v717 = vmul.f32 %v714, %v716
        %v718 = vadd.f32 %v714, %v717
        %vm719 = vweird.f32 %v713
        %vm720 = vweird.f32 %v714
        %vm721 = vmor %vm719, %vm720
        %v722 = vsel %vm721, %v714, %v718
        %v723 = vand.u32 2147483647, %v713
        %vm724 = vcmp.eq.f32.partialorder %v723, 8.507059e+37
        %v725 = vand.u32 %v713, 2147483648
        %v726 = vor.u32 1.1754944e-38, %v725
        %v727 = vsel %vm724, %v726, %v722
        %v728 = vmul.f32 1.0, %v727
        %v729 = vtanh.pop %v709
        %v730 = vmul.f32 %v728, %v675
        %732 = vrot.lane.b32.xlu0 %v729, 32
        %v733 = vpop.permute.xlu0 %732
        %v735 = vmul.f32 %v728, %v733
        %737 = vrot.lane.b32.xlu0 %v735, 32
        %v738 = vpop.permute.xlu0 %737
        %v740 = vadd.f32 %v730, %v738
        %v741 = vtanh.pop %v740
        %743 = vrot.lane.b32.xlu0 %v741, 32
        %v744 = vpop.permute.xlu0 %743
        %v746 = vmul.f32 %v728, %v744
        %v747 = vpack.c.bf16 %v746, %v746
        %749 = vrot.lane.b32.xlu0 %v747, 64
        %v750 = vpop.permute.xlu0 %749
        %s752 = scalar_lea.vmem [#allocation2], 12
        %753 = vst.msk [vmem:[%s752] sm:$0xf] %vm557, %v750
        %v754 = vunpack.c.l.b16 %v747
        %v755 = vpack.c.b16 %v754, %v754
        %756 = vrot.lane.b32.xlu0 %v755, 64
        %v757 = vpop.permute.xlu0 %756
        %v759 = vsel %vm497, %v757, 0
        %761 = vmatpush.bf16.msra.mxu0 0
        %762 = vmatpush.bf16.msra.mxu0 0
        %763 = vmatpush.bf16.msra.mxu0 0
        %764 = vmatpush.bf16.msra.mxu0 0
        %765 = vmatpush.bf16.msra.mxu0 0
        %766 = vmatpush.bf16.msra.mxu0 0
        %767 = vmatpush.bf16.msra.mxu0 %v494
        %768 = vmatpush.bf16.msra.mxu0 %v493
        %769 = vmatmul.bf16.gmra.mxu0 %v759
        %v770 = vpop.f32.mrf.mxu0
        %v771 = vadd.f32 0.0, %v770
        %v772 = vpop.f32.mrf.mxu0
        %773 = vdwg.mxu0
        %v774 = vadd.f32 %v476, %v771
        %v775 = vxor.u32 %v774, 2147483648
        %v776 = vmul.f32 %v775, 1.442695
        %v777 = vpow.pop %v776
        %v778 = vadd.f32 %v777, 1.0
        %v779 = vrcp.pop %v778
        %v780 = vmul.f32 %v778, %v779
        %v781 = vsub.f32 1.0, %v780
        %v782 = vmul.f32 %v779, %v781
        %v783 = vadd.f32 %v779, %v782
        %vm784 = vweird.f32 %v778
        %vm785 = vweird.f32 %v779
        %vm786 = vmor %vm784, %vm785
        %v787 = vsel %vm786, %v779, %v783
        %v788 = vand.u32 2147483647, %v778
        %vm789 = vcmp.eq.f32.partialorder %v788, 8.507059e+37
        %v790 = vand.u32 %v778, 2147483648
        %v791 = vor.u32 1.1754944e-38, %v790
        %v792 = vsel %vm789, %v791, %v787
        %v793 = vmul.f32 1.0, %v792
        %v794 = vtanh.pop %v774
        %v795 = vmul.f32 %v793, %v740
        %797 = vrot.lane.b32.xlu0 %v794, 32
        %v798 = vpop.permute.xlu0 %797
        %v800 = vmul.f32 %v793, %v798
        %802 = vrot.lane.b32.xlu0 %v800, 32
        %v803 = vpop.permute.xlu0 %802
        %v805 = vadd.f32 %v795, %v803
        %v806 = vtanh.pop %v805
        %808 = vrot.lane.b32.xlu0 %v806, 32
        %v809 = vpop.permute.xlu0 %808
        %v811 = vmul.f32 %v793, %v809
        %v812 = vpack.c.bf16 %v811, %v811
        %814 = vrot.lane.b32.xlu0 %v812, 64
        %v815 = vpop.permute.xlu0 %814
        %s817 = scalar_lea.vmem [#allocation2], 16
        %818 = vst.msk [vmem:[%s817] sm:$0xf] %vm557, %v815
        %v819 = vunpack.c.l.b16 %v812
        %v820 = vpack.c.b16 %v819, %v819
        %821 = vrot.lane.b32.xlu0 %v820, 64
        %v822 = vpop.permute.xlu0 %821
        %v824 = vsel %vm497, %v822, 0
        %826 = vmatpush.bf16.msra.mxu0 0
        %827 = vmatpush.bf16.msra.mxu0 0
        %828 = vmatpush.bf16.msra.mxu0 0
        %829 = vmatpush.bf16.msra.mxu0 0
        %830 = vmatpush.bf16.msra.mxu0 0
        %831 = vmatpush.bf16.msra.mxu0 0
        %832 = vmatpush.bf16.msra.mxu0 %v494
        %833 = vmatpush.bf16.msra.mxu0 %v493
        %834 = vmatmul.bf16.gmra.mxu0 %v824
        %v835 = vpop.f32.mrf.mxu0
        %v836 = vadd.f32 0.0, %v835
        %v837 = vpop.f32.mrf.mxu0
        %838 = vdwg.mxu0
        %v839 = vadd.f32 %v478, %v836
        %v840 = vxor.u32 %v839, 2147483648
        %v841 = vmul.f32 %v840, 1.442695
        %v842 = vpow.pop %v841
        %v843 = vadd.f32 %v842, 1.0
        %v844 = vrcp.pop %v843
        %v845 = vmul.f32 %v843, %v844
        %v846 = vsub.f32 1.0, %v845
        %v847 = vmul.f32 %v844, %v846
        %v848 = vadd.f32 %v844, %v847
        %vm849 = vweird.f32 %v843
        %vm850 = vweird.f32 %v844
        %vm851 = vmor %vm849, %vm850
        %v852 = vsel %vm851, %v844, %v848
        %v853 = vand.u32 2147483647, %v843
        %vm854 = vcmp.eq.f32.partialorder %v853, 8.507059e+37
        %v855 = vand.u32 %v843, 2147483648
        %v856 = vor.u32 1.1754944e-38, %v855
        %v857 = vsel %vm854, %v856, %v852
        %v858 = vmul.f32 1.0, %v857
        %v859 = vtanh.pop %v839
        %v860 = vmul.f32 %v858, %v805
        %862 = vrot.lane.b32.xlu0 %v859, 32
        %v863 = vpop.permute.xlu0 %862
        %v865 = vmul.f32 %v858, %v863
        %867 = vrot.lane.b32.xlu0 %v865, 32
        %v868 = vpop.permute.xlu0 %867
        %v870 = vadd.f32 %v860, %v868
        %v871 = vtanh.pop %v870
        %873 = vrot.lane.b32.xlu0 %v871, 32
        %v874 = vpop.permute.xlu0 %873
        %v876 = vmul.f32 %v858, %v874
        %v877 = vpack.c.bf16 %v876, %v876
        %879 = vrot.lane.b32.xlu0 %v877, 64
        %v880 = vpop.permute.xlu0 %879
        %s882 = scalar_lea.vmem [#allocation2], 20
        %883 = vst.msk [vmem:[%s882] sm:$0xf] %vm557, %v880
        %v884 = vunpack.c.l.b16 %v877
        %v885 = vpack.c.b16 %v884, %v884
        %886 = vrot.lane.b32.xlu0 %v885, 64
        %v887 = vpop.permute.xlu0 %886
        %v889 = vsel %vm497, %v887, 0
        %891 = vmatpush.bf16.msra.mxu0 0
        %892 = vmatpush.bf16.msra.mxu0 0
        %893 = vmatpush.bf16.msra.mxu0 0
        %894 = vmatpush.bf16.msra.mxu0 0
        %895 = vmatpush.bf16.msra.mxu0 0
        %896 = vmatpush.bf16.msra.mxu0 0
        %897 = vmatpush.bf16.msra.mxu0 %v494
        %898 = vmatpush.bf16.msra.mxu0 %v493
        %899 = vmatmul.bf16.gmra.mxu0 %v889
        %v900 = vpop.f32.mrf.mxu0
        %v901 = vadd.f32 0.0, %v900
        %v902 = vpop.f32.mrf.mxu0
        %903 = vdwg.mxu0
        %v904 = vadd.f32 %v481, %v901
        %v905 = vxor.u32 %v904, 2147483648
        %v906 = vmul.f32 %v905, 1.442695
        %v907 = vpow.pop %v906
        %v908 = vadd.f32 %v907, 1.0
        %v909 = vrcp.pop %v908
        %v910 = vmul.f32 %v908, %v909
        %v911 = vsub.f32 1.0, %v910
        %v912 = vmul.f32 %v909, %v911
        %v913 = vadd.f32 %v909, %v912
        %vm914 = vweird.f32 %v908
        %vm915 = vweird.f32 %v909
        %vm916 = vmor %vm914, %vm915
        %v917 = vsel %vm916, %v909, %v913
        %v918 = vand.u32 2147483647, %v908
        %vm919 = vcmp.eq.f32.partialorder %v918, 8.507059e+37
        %v920 = vand.u32 %v908, 2147483648
        %v921 = vor.u32 1.1754944e-38, %v920
        %v922 = vsel %vm919, %v921, %v917
        %v923 = vmul.f32 1.0, %v922
        %v924 = vtanh.pop %v904
        %v925 = vmul.f32 %v923, %v870
        %927 = vrot.lane.b32.xlu0 %v924, 32
        %v928 = vpop.permute.xlu0 %927
        %v930 = vmul.f32 %v923, %v928
        %932 = vrot.lane.b32.xlu0 %v930, 32
        %v933 = vpop.permute.xlu0 %932
        %v935 = vadd.f32 %v925, %v933
        %v936 = vtanh.pop %v935
        %938 = vrot.lane.b32.xlu0 %v936, 32
        %v939 = vpop.permute.xlu0 %938
        %v941 = vmul.f32 %v923, %v939
        %v942 = vpack.c.bf16 %v941, %v941
        %944 = vrot.lane.b32.xlu0 %v942, 64
        %v945 = vpop.permute.xlu0 %944
        %s947 = scalar_lea.vmem [#allocation2], 24
        %948 = vst.msk [vmem:[%s947] sm:$0xf] %vm557, %v945
        %v949 = vunpack.c.l.b16 %v942
        %v950 = vpack.c.b16 %v949, %v949
        %951 = vrot.lane.b32.xlu0 %v950, 64
        %v952 = vpop.permute.xlu0 %951
        %v954 = vsel %vm497, %v952, 0
        %956 = vmatpush.bf16.msra.mxu0 0
        %957 = vmatpush.bf16.msra.mxu0 0
        %958 = vmatpush.bf16.msra.mxu0 0
        %959 = vmatpush.bf16.msra.mxu0 0
        %960 = vmatpush.bf16.msra.mxu0 0
        %961 = vmatpush.bf16.msra.mxu0 0
        %962 = vmatpush.bf16.msra.mxu0 %v494
        %963 = vmatpush.bf16.msra.mxu0 %v493
        %964 = vmatmul.bf16.gmra.mxu0 %v954
        %v965 = vpop.f32.mrf.mxu0
        %v966 = vadd.f32 0.0, %v965
        %v967 = vpop.f32.mrf.mxu0
        %968 = vdwg.mxu0
        %v969 = vadd.f32 %v483, %v966
        %v970 = vxor.u32 %v969, 2147483648
        %v971 = vmul.f32 %v970, 1.442695
        %v972 = vpow.pop %v971
        %v973 = vadd.f32 %v972, 1.0
        %v974 = vrcp.pop %v973
        %v975 = vmul.f32 %v973, %v974
        %v976 = vsub.f32 1.0, %v975
        %v977 = vmul.f32 %v974, %v976
        %v978 = vadd.f32 %v974, %v977
        %vm979 = vweird.f32 %v973
        %vm980 = vweird.f32 %v974
        %vm981 = vmor %vm979, %vm980
        %v982 = vsel %vm981, %v974, %v978
        %v983 = vand.u32 2147483647, %v973
        %vm984 = vcmp.eq.f32.partialorder %v983, 8.507059e+37
        %v985 = vand.u32 %v973, 2147483648
        %v986 = vor.u32 1.1754944e-38, %v985
        %v987 = vsel %vm984, %v986, %v982
        %v988 = vmul.f32 1.0, %v987
        %v989 = vtanh.pop %v969
        %v990 = vmul.f32 %v988, %v935
        %992 = vrot.lane.b32.xlu0 %v989, 32
        %v993 = vpop.permute.xlu0 %992
        %v995 = vmul.f32 %v988, %v993
        %997 = vrot.lane.b32.xlu0 %v995, 32
        %v998 = vpop.permute.xlu0 %997
        %v1000 = vadd.f32 %v990, %v998
        %v1001 = vtanh.pop %v1000
        %1003 = vrot.lane.b32.xlu0 %v1001, 32
        %v1004 = vpop.permute.xlu0 %1003
        %v1006 = vmul.f32 %v988, %v1004
        %v1007 = vpack.c.bf16 %v1006, %v1006
        %1009 = vrot.lane.b32.xlu0 %v1007, 64
        %v1010 = vpop.permute.xlu0 %1009
        %s1012 = scalar_lea.vmem [#allocation2], 28
        %1013 = vst.msk [vmem:[%s1012] sm:$0xf] %vm557, %v1010
        %v1014 = vld [vmem:[#allocation2] sm:$0xf]
        %v1015 = vld [vmem:[#allocation2 + $0x4] sm:$0xf]
        %v1016 = vld [vmem:[#allocation2 + $0x8] sm:$0xf]
        %v1017 = vld [vmem:[#allocation2 + $0xc] sm:$0xf]
        %v1018 = vld [vmem:[#allocation2 + $0x10] sm:$0xf]
        %v1019 = vld [vmem:[#allocation2 + $0x14] sm:$0xf]
        %v1020 = vld [vmem:[#allocation2 + $0x18] sm:$0xf]
        %v1021 = vld [vmem:[#allocation2 + $0x1c] sm:$0xf]
        %v1022 = vld [vmem:[%s4] sm:$0xf]
        %v1023 = vld [vmem:[%s4 + $0x4] sm:$0xf]
        %v1024 = vld [vmem:[%s4 + $0x8] sm:$0xf]
        %v1025 = vld [vmem:[%s4 + $0xc] sm:$0xf]
        %v1026 = vld [vmem:[%s5] sm:$0xf]
        %v1027 = vld [vmem:[%s5 + $0x4] sm:$0xf]
        %v1028 = vld [vmem:[%s5 + $0x8] sm:$0xf]
        %v1029 = vld [vmem:[%s5 + $0xc] sm:$0xf]
        %v1030 = vld [vmem:[%s6] sm:$0x1]
        %v1032 = vperm.slane %v1030, 0
        %v1042 = vunpack.c.l.b16 %v1014
        %v1043 = vunpack.c.l.b16 %v1015
        %v1044 = vunpack.c.l.b16 %v1016
        %v1045 = vunpack.c.l.b16 %v1017
        %v1046 = vunpack.c.l.b16 %v1018
        %v1047 = vunpack.c.l.b16 %v1019
        %v1048 = vunpack.c.l.b16 %v1020
        %v1049 = vunpack.c.l.b16 %v1021
        %v1050 = vpack.c.b16 %v1043, %v1042
        %v1051 = vpack.c.b16 %v1045, %v1044
        %v1052 = vpack.c.b16 %v1047, %v1046
        %v1053 = vpack.c.b16 %v1049, %v1048
        %v1058 = vunpack.c.l.b16 %v1022
        %v1059 = vunpack.c.l.b16 %v1023
        %v1060 = vunpack.c.l.b16 %v1024
        %v1061 = vunpack.c.l.b16 %v1025
        %v1062 = vpack.c.b16 %v1059, %v1058
        %v1063 = vpack.c.b16 %v1061, %v1060
        %v1067 = vsel %vm497, %v1050, 0
        %v1070 = vsel %vm497, %v1051, 0
        %v1073 = vsel %vm497, %v1052, 0
        %v1076 = vsel %vm497, %v1053, 0
        %1078 = vmatpush.bf16.msra.mxu0 0
        %1079 = vmatpush.bf16.msra.mxu0 0
        %1080 = vmatpush.bf16.msra.mxu0 0
        %1081 = vmatpush.bf16.msra.mxu0 0
        %1082 = vmatpush.bf16.msra.mxu0 0
        %1083 = vmatpush.bf16.msra.mxu0 0
        %1084 = vmatpush.bf16.msra.mxu0 %v1063
        %1085 = vmatpush.bf16.msra.mxu0 %v1062
        %1086 = vmatmul.bf16.gmra.mxu0 %v1067
        %v1087 = vpop.f32.mrf.mxu0
        %v1088 = vadd.f32 %v1032, %v1087
        %v1089 = vpop.f32.mrf.mxu0
        %v1090 = vadd.f32 %v1032, %v1089
        %1091 = vmatmul.bf16.gmra.mxu0 %v1070
        %v1092 = vpop.f32.mrf.mxu0
        %v1093 = vadd.f32 %v1032, %v1092
        %v1094 = vpop.f32.mrf.mxu0
        %v1095 = vadd.f32 %v1032, %v1094
        %1096 = vmatmul.bf16.gmra.mxu0 %v1073
        %v1097 = vpop.f32.mrf.mxu0
        %v1098 = vadd.f32 %v1032, %v1097
        %v1099 = vpop.f32.mrf.mxu0
        %v1100 = vadd.f32 %v1032, %v1099
        %1101 = vmatmul.bf16.gmra.mxu0 %v1076
        %v1102 = vpop.f32.mrf.mxu0
        %v1103 = vadd.f32 %v1032, %v1102
        %v1104 = vpop.f32.mrf.mxu0
        %v1105 = vadd.f32 %v1032, %v1104
        %1106 = vdwg.mxu0
        %v1111 = vunpack.c.l.b16 %v1026
        %v1112 = vunpack.c.l.b16 %v1027
        %v1113 = vunpack.c.l.b16 %v1028
        %v1114 = vunpack.c.l.b16 %v1029
        %v1115 = vpack.c.b16 %v1112, %v1111
        %v1116 = vpack.c.b16 %v1114, %v1113
        %1119 = vmatpush.bf16.msra.mxu0 0
        %1120 = vmatpush.bf16.msra.mxu0 0
        %1121 = vmatpush.bf16.msra.mxu0 0
        %1122 = vmatpush.bf16.msra.mxu0 0
        %1123 = vmatpush.bf16.msra.mxu0 0
        %1124 = vmatpush.bf16.msra.mxu0 0
        %1125 = vmatpush.bf16.msra.mxu0 %v1116
        %1126 = vmatpush.bf16.msra.mxu0 %v1115
        %1127 = vmatmul.bf16.gmra.mxu0 %v499
        %v1128 = vpop.f32.mrf.mxu0
        %v1129 = vadd.f32 0.0, %v1128
        %v1130 = vpop.f32.mrf.mxu0
        %1131 = vdwg.mxu0
        %v1132 = vadd.f32 %v1088, %v1129
        %v1133 = vxor.u32 %v1132, 2147483648
        %v1134 = vmul.f32 %v1133, 1.442695
        %v1135 = vpow.pop %v1134
        %v1136 = vadd.f32 %v1135, 1.0
        %v1137 = vrcp.pop %v1136
        %v1138 = vmul.f32 %v1136, %v1137
        %v1139 = vsub.f32 1.0, %v1138
        %v1140 = vmul.f32 %v1137, %v1139
        %v1141 = vadd.f32 %v1137, %v1140
        %vm1142 = vweird.f32 %v1136
        %vm1143 = vweird.f32 %v1137
        %vm1144 = vmor %vm1142, %vm1143
        %v1145 = vsel %vm1144, %v1137, %v1141
        %v1146 = vand.u32 2147483647, %v1136
        %vm1147 = vcmp.eq.f32.partialorder %v1146, 8.507059e+37
        %v1148 = vand.u32 %v1136, 2147483648
        %v1149 = vor.u32 1.1754944e-38, %v1148
        %v1150 = vsel %vm1147, %v1149, %v1145
        %v1151 = vmul.f32 1.0, %v1150
        %v1152 = vtanh.pop %v1132
        %v1153 = vmul.f32 %v1151, 0.0
        %1155 = vrot.lane.b32.xlu0 %v1152, 32
        %v1156 = vpop.permute.xlu0 %1155
        %v1158 = vmul.f32 %v1151, %v1156
        %1160 = vrot.lane.b32.xlu0 %v1158, 32
        %v1161 = vpop.permute.xlu0 %1160
        %v1163 = vadd.f32 %v1153, %v1161
        %v1164 = vtanh.pop %v1163
        %1166 = vrot.lane.b32.xlu0 %v1164, 32
        %v1167 = vpop.permute.xlu0 %1166
        %v1169 = vmul.f32 %v1151, %v1167
        %v1170 = vpack.c.bf16 %v1169, %v1169
        %1172 = vrot.lane.b32.xlu0 %v1170, 64
        %v1173 = vpop.permute.xlu0 %1172
        %1175 = vst.msk [vmem:[#allocation2] sm:$0xf] %vm557, %v1173
        %v1176 = vunpack.c.l.b16 %v1170
        %v1177 = vpack.c.b16 %v1176, %v1176
        %1178 = vrot.lane.b32.xlu0 %v1177, 64
        %v1179 = vpop.permute.xlu0 %1178
        %v1181 = vsel %vm497, %v1179, 0
        %1183 = vmatpush.bf16.msra.mxu0 0
        %1184 = vmatpush.bf16.msra.mxu0 0
        %1185 = vmatpush.bf16.msra.mxu0 0
        %1186 = vmatpush.bf16.msra.mxu0 0
        %1187 = vmatpush.bf16.msra.mxu0 0
        %1188 = vmatpush.bf16.msra.mxu0 0
        %1189 = vmatpush.bf16.msra.mxu0 %v1116
        %1190 = vmatpush.bf16.msra.mxu0 %v1115
        %1191 = vmatmul.bf16.gmra.mxu0 %v1181
        %v1192 = vpop.f32.mrf.mxu0
        %v1193 = vadd.f32 0.0, %v1192
        %v1194 = vpop.f32.mrf.mxu0
        %1195 = vdwg.mxu0
        %v1196 = vadd.f32 %v1090, %v1193
        %v1197 = vxor.u32 %v1196, 2147483648
        %v1198 = vmul.f32 %v1197, 1.442695
        %v1199 = vpow.pop %v1198
        %v1200 = vadd.f32 %v1199, 1.0
        %v1201 = vrcp.pop %v1200
        %v1202 = vmul.f32 %v1200, %v1201
        %v1203 = vsub.f32 1.0, %v1202
        %v1204 = vmul.f32 %v1201, %v1203
        %v1205 = vadd.f32 %v1201, %v1204
        %vm1206 = vweird.f32 %v1200
        %vm1207 = vweird.f32 %v1201
        %vm1208 = vmor %vm1206, %vm1207
        %v1209 = vsel %vm1208, %v1201, %v1205
        %v1210 = vand.u32 2147483647, %v1200
        %vm1211 = vcmp.eq.f32.partialorder %v1210, 8.507059e+37
        %v1212 = vand.u32 %v1200, 2147483648
        %v1213 = vor.u32 1.1754944e-38, %v1212
        %v1214 = vsel %vm1211, %v1213, %v1209
        %v1215 = vmul.f32 1.0, %v1214
        %v1216 = vtanh.pop %v1196
        %v1217 = vmul.f32 %v1215, %v1163
        %1219 = vrot.lane.b32.xlu0 %v1216, 32
        %v1220 = vpop.permute.xlu0 %1219
        %v1222 = vmul.f32 %v1215, %v1220
        %1224 = vrot.lane.b32.xlu0 %v1222, 32
        %v1225 = vpop.permute.xlu0 %1224
        %v1227 = vadd.f32 %v1217, %v1225
        %v1228 = vtanh.pop %v1227
        %1230 = vrot.lane.b32.xlu0 %v1228, 32
        %v1231 = vpop.permute.xlu0 %1230
        %v1233 = vmul.f32 %v1215, %v1231
        %v1234 = vpack.c.bf16 %v1233, %v1233
        %1236 = vrot.lane.b32.xlu0 %v1234, 64
        %v1237 = vpop.permute.xlu0 %1236
        %1239 = vst.msk [vmem:[%s622] sm:$0xf] %vm557, %v1237
        %v1240 = vunpack.c.l.b16 %v1234
        %v1241 = vpack.c.b16 %v1240, %v1240
        %1242 = vrot.lane.b32.xlu0 %v1241, 64
        %v1243 = vpop.permute.xlu0 %1242
        %v1245 = vsel %vm497, %v1243, 0
        %1247 = vmatpush.bf16.msra.mxu0 0
        %1248 = vmatpush.bf16.msra.mxu0 0
        %1249 = vmatpush.bf16.msra.mxu0 0
        %1250 = vmatpush.bf16.msra.mxu0 0
        %1251 = vmatpush.bf16.msra.mxu0 0
        %1252 = vmatpush.bf16.msra.mxu0 0
        %1253 = vmatpush.bf16.msra.mxu0 %v1116
        %1254 = vmatpush.bf16.msra.mxu0 %v1115
        %1255 = vmatmul.bf16.gmra.mxu0 %v1245
        %v1256 = vpop.f32.mrf.mxu0
        %v1257 = vadd.f32 0.0, %v1256
        %v1258 = vpop.f32.mrf.mxu0
        %1259 = vdwg.mxu0
        %v1260 = vadd.f32 %v1093, %v1257
        %v1261 = vxor.u32 %v1260, 2147483648
        %v1262 = vmul.f32 %v1261, 1.442695
        %v1263 = vpow.pop %v1262
        %v1264 = vadd.f32 %v1263, 1.0
        %v1265 = vrcp.pop %v1264
        %v1266 = vmul.f32 %v1264, %v1265
        %v1267 = vsub.f32 1.0, %v1266
        %v1268 = vmul.f32 %v1265, %v1267
        %v1269 = vadd.f32 %v1265, %v1268
        %vm1270 = vweird.f32 %v1264
        %vm1271 = vweird.f32 %v1265
        %vm1272 = vmor %vm1270, %vm1271
        %v1273 = vsel %vm1272, %v1265, %v1269
        %v1274 = vand.u32 2147483647, %v1264
        %vm1275 = vcmp.eq.f32.partialorder %v1274, 8.507059e+37
        %v1276 = vand.u32 %v1264, 2147483648
        %v1277 = vor.u32 1.1754944e-38, %v1276
        %v1278 = vsel %vm1275, %v1277, %v1273
        %v1279 = vmul.f32 1.0, %v1278
        %v1280 = vtanh.pop %v1260
        %v1281 = vmul.f32 %v1279, %v1227
        %1283 = vrot.lane.b32.xlu0 %v1280, 32
        %v1284 = vpop.permute.xlu0 %1283
        %v1286 = vmul.f32 %v1279, %v1284
        %1288 = vrot.lane.b32.xlu0 %v1286, 32
        %v1289 = vpop.permute.xlu0 %1288
        %v1291 = vadd.f32 %v1281, %v1289
        %v1292 = vtanh.pop %v1291
        %1294 = vrot.lane.b32.xlu0 %v1292, 32
        %v1295 = vpop.permute.xlu0 %1294
        %v1297 = vmul.f32 %v1279, %v1295
        %v1298 = vpack.c.bf16 %v1297, %v1297
        %1300 = vrot.lane.b32.xlu0 %v1298, 64
        %v1301 = vpop.permute.xlu0 %1300
        %1303 = vst.msk [vmem:[%s687] sm:$0xf] %vm557, %v1301
        %v1304 = vunpack.c.l.b16 %v1298
        %v1305 = vpack.c.b16 %v1304, %v1304
        %1306 = vrot.lane.b32.xlu0 %v1305, 64
        %v1307 = vpop.permute.xlu0 %1306
        %v1309 = vsel %vm497, %v1307, 0
        %1311 = vmatpush.bf16.msra.mxu0 0
        %1312 = vmatpush.bf16.msra.mxu0 0
        %1313 = vmatpush.bf16.msra.mxu0 0
        %1314 = vmatpush.bf16.msra.mxu0 0
        %1315 = vmatpush.bf16.msra.mxu0 0
        %1316 = vmatpush.bf16.msra.mxu0 0
        %1317 = vmatpush.bf16.msra.mxu0 %v1116
        %1318 = vmatpush.bf16.msra.mxu0 %v1115
        %1319 = vmatmul.bf16.gmra.mxu0 %v1309
        %v1320 = vpop.f32.mrf.mxu0
        %v1321 = vadd.f32 0.0, %v1320
        %v1322 = vpop.f32.mrf.mxu0
        %1323 = vdwg.mxu0
        %v1324 = vadd.f32 %v1095, %v1321
        %v1325 = vxor.u32 %v1324, 2147483648
        %v1326 = vmul.f32 %v1325, 1.442695
        %v1327 = vpow.pop %v1326
        %v1328 = vadd.f32 %v1327, 1.0
        %v1329 = vrcp.pop %v1328
        %v1330 = vmul.f32 %v1328, %v1329
        %v1331 = vsub.f32 1.0, %v1330
        %v1332 = vmul.f32 %v1329, %v1331
        %v1333 = vadd.f32 %v1329, %v1332
        %vm1334 = vweird.f32 %v1328
        %vm1335 = vweird.f32 %v1329
        %vm1336 = vmor %vm1334, %vm1335
        %v1337 = vsel %vm1336, %v1329, %v1333
        %v1338 = vand.u32 2147483647, %v1328
        %vm1339 = vcmp.eq.f32.partialorder %v1338, 8.507059e+37
        %v1340 = vand.u32 %v1328, 2147483648
        %v1341 = vor.u32 1.1754944e-38, %v1340
        %v1342 = vsel %vm1339, %v1341, %v1337
        %v1343 = vmul.f32 1.0, %v1342
        %v1344 = vtanh.pop %v1324
        %v1345 = vmul.f32 %v1343, %v1291
        %1347 = vrot.lane.b32.xlu0 %v1344, 32
        %v1348 = vpop.permute.xlu0 %1347
        %v1350 = vmul.f32 %v1343, %v1348
        %1352 = vrot.lane.b32.xlu0 %v1350, 32
        %v1353 = vpop.permute.xlu0 %1352
        %v1355 = vadd.f32 %v1345, %v1353
        %v1356 = vtanh.pop %v1355
        %1358 = vrot.lane.b32.xlu0 %v1356, 32
        %v1359 = vpop.permute.xlu0 %1358
        %v1361 = vmul.f32 %v1343, %v1359
        %v1362 = vpack.c.bf16 %v1361, %v1361
        %1364 = vrot.lane.b32.xlu0 %v1362, 64
        %v1365 = vpop.permute.xlu0 %1364
        %1367 = vst.msk [vmem:[%s752] sm:$0xf] %vm557, %v1365
        %v1368 = vunpack.c.l.b16 %v1362
        %v1369 = vpack.c.b16 %v1368, %v1368
        %1370 = vrot.lane.b32.xlu0 %v1369, 64
        %v1371 = vpop.permute.xlu0 %1370
        %v1373 = vsel %vm497, %v1371, 0
        %1375 = vmatpush.bf16.msra.mxu0 0
        %1376 = vmatpush.bf16.msra.mxu0 0
        %1377 = vmatpush.bf16.msra.mxu0 0
        %1378 = vmatpush.bf16.msra.mxu0 0
        %1379 = vmatpush.bf16.msra.mxu0 0
        %1380 = vmatpush.bf16.msra.mxu0 0
        %1381 = vmatpush.bf16.msra.mxu0 %v1116
        %1382 = vmatpush.bf16.msra.mxu0 %v1115
        %1383 = vmatmul.bf16.gmra.mxu0 %v1373
        %v1384 = vpop.f32.mrf.mxu0
        %v1385 = vadd.f32 0.0, %v1384
        %v1386 = vpop.f32.mrf.mxu0
        %1387 = vdwg.mxu0
        %v1388 = vadd.f32 %v1098, %v1385
        %v1389 = vxor.u32 %v1388, 2147483648
        %v1390 = vmul.f32 %v1389, 1.442695
        %v1391 = vpow.pop %v1390
        %v1392 = vadd.f32 %v1391, 1.0
        %v1393 = vrcp.pop %v1392
        %v1394 = vmul.f32 %v1392, %v1393
        %v1395 = vsub.f32 1.0, %v1394
        %v1396 = vmul.f32 %v1393, %v1395
        %v1397 = vadd.f32 %v1393, %v1396
        %vm1398 = vweird.f32 %v1392
        %vm1399 = vweird.f32 %v1393
        %vm1400 = vmor %vm1398, %vm1399
        %v1401 = vsel %vm1400, %v1393, %v1397
        %v1402 = vand.u32 2147483647, %v1392
        %vm1403 = vcmp.eq.f32.partialorder %v1402, 8.507059e+37
        %v1404 = vand.u32 %v1392, 2147483648
        %v1405 = vor.u32 1.1754944e-38, %v1404
        %v1406 = vsel %vm1403, %v1405, %v1401
        %v1407 = vmul.f32 1.0, %v1406
        %v1408 = vtanh.pop %v1388
        %v1409 = vmul.f32 %v1407, %v1355
        %1411 = vrot.lane.b32.xlu0 %v1408, 32
        %v1412 = vpop.permute.xlu0 %1411
        %v1414 = vmul.f32 %v1407, %v1412
        %1416 = vrot.lane.b32.xlu0 %v1414, 32
        %v1417 = vpop.permute.xlu0 %1416
        %v1419 = vadd.f32 %v1409, %v1417
        %v1420 = vtanh.pop %v1419
        %1422 = vrot.lane.b32.xlu0 %v1420, 32
        %v1423 = vpop.permute.xlu0 %1422
        %v1425 = vmul.f32 %v1407, %v1423
        %v1426 = vpack.c.bf16 %v1425, %v1425
        %1428 = vrot.lane.b32.xlu0 %v1426, 64
        %v1429 = vpop.permute.xlu0 %1428
        %1431 = vst.msk [vmem:[%s817] sm:$0xf] %vm557, %v1429
        %v1432 = vunpack.c.l.b16 %v1426
        %v1433 = vpack.c.b16 %v1432, %v1432
        %1434 = vrot.lane.b32.xlu0 %v1433, 64
        %v1435 = vpop.permute.xlu0 %1434
        %v1437 = vsel %vm497, %v1435, 0
        %1439 = vmatpush.bf16.msra.mxu0 0
        %1440 = vmatpush.bf16.msra.mxu0 0
        %1441 = vmatpush.bf16.msra.mxu0 0
        %1442 = vmatpush.bf16.msra.mxu0 0
        %1443 = vmatpush.bf16.msra.mxu0 0
        %1444 = vmatpush.bf16.msra.mxu0 0
        %1445 = vmatpush.bf16.msra.mxu0 %v1116
        %1446 = vmatpush.bf16.msra.mxu0 %v1115
        %1447 = vmatmul.bf16.gmra.mxu0 %v1437
        %v1448 = vpop.f32.mrf.mxu0
        %v1449 = vadd.f32 0.0, %v1448
        %v1450 = vpop.f32.mrf.mxu0
        %1451 = vdwg.mxu0
        %v1452 = vadd.f32 %v1100, %v1449
        %v1453 = vxor.u32 %v1452, 2147483648
        %v1454 = vmul.f32 %v1453, 1.442695
        %v1455 = vpow.pop %v1454
        %v1456 = vadd.f32 %v1455, 1.0
        %v1457 = vrcp.pop %v1456
        %v1458 = vmul.f32 %v1456, %v1457
        %v1459 = vsub.f32 1.0, %v1458
        %v1460 = vmul.f32 %v1457, %v1459
        %v1461 = vadd.f32 %v1457, %v1460
        %vm1462 = vweird.f32 %v1456
        %vm1463 = vweird.f32 %v1457
        %vm1464 = vmor %vm1462, %vm1463
        %v1465 = vsel %vm1464, %v1457, %v1461
        %v1466 = vand.u32 2147483647, %v1456
        %vm1467 = vcmp.eq.f32.partialorder %v1466, 8.507059e+37
        %v1468 = vand.u32 %v1456, 2147483648
        %v1469 = vor.u32 1.1754944e-38, %v1468
        %v1470 = vsel %vm1467, %v1469, %v1465
        %v1471 = vmul.f32 1.0, %v1470
        %v1472 = vtanh.pop %v1452
        %v1473 = vmul.f32 %v1471, %v1419
        %1475 = vrot.lane.b32.xlu0 %v1472, 32
        %v1476 = vpop.permute.xlu0 %1475
        %v1478 = vmul.f32 %v1471, %v1476
        %1480 = vrot.lane.b32.xlu0 %v1478, 32
        %v1481 = vpop.permute.xlu0 %1480
        %v1483 = vadd.f32 %v1473, %v1481
        %v1484 = vtanh.pop %v1483
        %1486 = vrot.lane.b32.xlu0 %v1484, 32
        %v1487 = vpop.permute.xlu0 %1486
        %v1489 = vmul.f32 %v1471, %v1487
        %v1490 = vpack.c.bf16 %v1489, %v1489
        %1492 = vrot.lane.b32.xlu0 %v1490, 64
        %v1493 = vpop.permute.xlu0 %1492
        %1495 = vst.msk [vmem:[%s882] sm:$0xf] %vm557, %v1493
        %v1496 = vunpack.c.l.b16 %v1490
        %v1497 = vpack.c.b16 %v1496, %v1496
        %1498 = vrot.lane.b32.xlu0 %v1497, 64
        %v1499 = vpop.permute.xlu0 %1498
        %v1501 = vsel %vm497, %v1499, 0
        %1503 = vmatpush.bf16.msra.mxu0 0
        %1504 = vmatpush.bf16.msra.mxu0 0
        %1505 = vmatpush.bf16.msra.mxu0 0
        %1506 = vmatpush.bf16.msra.mxu0 0
        %1507 = vmatpush.bf16.msra.mxu0 0
        %1508 = vmatpush.bf16.msra.mxu0 0
        %1509 = vmatpush.bf16.msra.mxu0 %v1116
        %1510 = vmatpush.bf16.msra.mxu0 %v1115
        %1511 = vmatmul.bf16.gmra.mxu0 %v1501
        %v1512 = vpop.f32.mrf.mxu0
        %v1513 = vadd.f32 0.0, %v1512
        %v1514 = vpop.f32.mrf.mxu0
        %1515 = vdwg.mxu0
        %v1516 = vadd.f32 %v1103, %v1513
        %v1517 = vxor.u32 %v1516, 2147483648
        %v1518 = vmul.f32 %v1517, 1.442695
        %v1519 = vpow.pop %v1518
        %v1520 = vadd.f32 %v1519, 1.0
        %v1521 = vrcp.pop %v1520
        %v1522 = vmul.f32 %v1520, %v1521
        %v1523 = vsub.f32 1.0, %v1522
        %v1524 = vmul.f32 %v1521, %v1523
        %v1525 = vadd.f32 %v1521, %v1524
        %vm1526 = vweird.f32 %v1520
        %vm1527 = vweird.f32 %v1521
        %vm1528 = vmor %vm1526, %vm1527
        %v1529 = vsel %vm1528, %v1521, %v1525
        %v1530 = vand.u32 2147483647, %v1520
        %vm1531 = vcmp.eq.f32.partialorder %v1530, 8.507059e+37
        %v1532 = vand.u32 %v1520, 2147483648
        %v1533 = vor.u32 1.1754944e-38, %v1532
        %v1534 = vsel %vm1531, %v1533, %v1529
        %v1535 = vmul.f32 1.0, %v1534
        %v1536 = vtanh.pop %v1516
        %v1537 = vmul.f32 %v1535, %v1483
        %1539 = vrot.lane.b32.xlu0 %v1536, 32
        %v1540 = vpop.permute.xlu0 %1539
        %v1542 = vmul.f32 %v1535, %v1540
        %1544 = vrot.lane.b32.xlu0 %v1542, 32
        %v1545 = vpop.permute.xlu0 %1544
        %v1547 = vadd.f32 %v1537, %v1545
        %v1548 = vtanh.pop %v1547
        %1550 = vrot.lane.b32.xlu0 %v1548, 32
        %v1551 = vpop.permute.xlu0 %1550
        %v1553 = vmul.f32 %v1535, %v1551
        %v1554 = vpack.c.bf16 %v1553, %v1553
        %1556 = vrot.lane.b32.xlu0 %v1554, 64
        %v1557 = vpop.permute.xlu0 %1556
        %1559 = vst.msk [vmem:[%s947] sm:$0xf] %vm557, %v1557
        %v1560 = vunpack.c.l.b16 %v1554
        %v1561 = vpack.c.b16 %v1560, %v1560
        %1562 = vrot.lane.b32.xlu0 %v1561, 64
        %v1563 = vpop.permute.xlu0 %1562
        %v1565 = vsel %vm497, %v1563, 0
        %1567 = vmatpush.bf16.msra.mxu0 0
        %1568 = vmatpush.bf16.msra.mxu0 0
        %1569 = vmatpush.bf16.msra.mxu0 0
        %1570 = vmatpush.bf16.msra.mxu0 0
        %1571 = vmatpush.bf16.msra.mxu0 0
        %1572 = vmatpush.bf16.msra.mxu0 0
        %1573 = vmatpush.bf16.msra.mxu0 %v1116
        %1574 = vmatpush.bf16.msra.mxu0 %v1115
        %1575 = vmatmul.bf16.gmra.mxu0 %v1565
        %v1576 = vpop.f32.mrf.mxu0
        %v1577 = vadd.f32 0.0, %v1576
        %v1578 = vpop.f32.mrf.mxu0
        %1579 = vdwg.mxu0
        %v1580 = vadd.f32 %v1105, %v1577
        %v1581 = vxor.u32 %v1580, 2147483648
        %v1582 = vmul.f32 %v1581, 1.442695
        %v1583 = vpow.pop %v1582
        %v1584 = vadd.f32 %v1583, 1.0
        %v1585 = vrcp.pop %v1584
        %v1586 = vmul.f32 %v1584, %v1585
        %v1587 = vsub.f32 1.0, %v1586
        %v1588 = vmul.f32 %v1585, %v1587
        %v1589 = vadd.f32 %v1585, %v1588
        %vm1590 = vweird.f32 %v1584
        %vm1591 = vweird.f32 %v1585
        %vm1592 = vmor %vm1590, %vm1591
        %v1593 = vsel %vm1592, %v1585, %v1589
        %v1594 = vand.u32 2147483647, %v1584
        %vm1595 = vcmp.eq.f32.partialorder %v1594, 8.507059e+37
        %v1596 = vand.u32 %v1584, 2147483648
        %v1597 = vor.u32 1.1754944e-38, %v1596
        %v1598 = vsel %vm1595, %v1597, %v1593
        %v1599 = vmul.f32 1.0, %v1598
        %v1600 = vtanh.pop %v1580
        %v1601 = vmul.f32 %v1599, %v1547
        %1603 = vrot.lane.b32.xlu0 %v1600, 32
        %v1604 = vpop.permute.xlu0 %1603
        %v1606 = vmul.f32 %v1599, %v1604
        %1608 = vrot.lane.b32.xlu0 %v1606, 32
        %v1609 = vpop.permute.xlu0 %1608
        %v1611 = vadd.f32 %v1601, %v1609
        %v1612 = vtanh.pop %v1611
        %1614 = vrot.lane.b32.xlu0 %v1612, 32
        %v1615 = vpop.permute.xlu0 %1614
        %v1617 = vmul.f32 %v1599, %v1615
        %v1618 = vpack.c.bf16 %v1617, %v1617
        %1620 = vrot.lane.b32.xlu0 %v1618, 64
        %v1621 = vpop.permute.xlu0 %1620
        %1623 = vst.msk [vmem:[%s1012] sm:$0xf] %vm557, %v1621
        %v1624 = vld [vmem:[#allocation2] sm:$0xf]
        %v1625 = vld [vmem:[#allocation2 + $0x4] sm:$0xf]
        %v1626 = vld [vmem:[#allocation2 + $0x8] sm:$0xf]
        %v1627 = vld [vmem:[#allocation2 + $0xc] sm:$0xf]
        %v1628 = vld [vmem:[#allocation2 + $0x10] sm:$0xf]
        %v1629 = vld [vmem:[#allocation2 + $0x14] sm:$0xf]
        %v1630 = vld [vmem:[#allocation2 + $0x18] sm:$0xf]
        %v1631 = vld [vmem:[#allocation2 + $0x1c] sm:$0xf]
        %v1632 = vunpack.c.l.bf16 %v1624
        %v1633 = vunpack.c.l.bf16 %v1625
        %v1634 = vunpack.c.l.bf16 %v1626
        %v1635 = vunpack.c.l.bf16 %v1627
        %v1636 = vunpack.c.l.bf16 %v1628
        %v1637 = vunpack.c.l.bf16 %v1629
        %v1638 = vunpack.c.l.bf16 %v1630
        %v1639 = vunpack.c.l.bf16 %v1631
        %v1640 = vmax.f32 %v1632, 0.0
        %v1641 = vmax.f32 %v1633, 0.0
        %v1642 = vmax.f32 %v1634, 0.0
        %v1643 = vmax.f32 %v1635, 0.0
        %v1644 = vmax.f32 %v1636, 0.0
        %v1645 = vmax.f32 %v1637, 0.0
        %v1646 = vmax.f32 %v1638, 0.0
        %v1647 = vmax.f32 %v1639, 0.0
        %v1648 = vpack.c.bf16 %v1641, %v1640
        %v1649 = vpack.c.bf16 %v1643, %v1642
        %v1650 = vpack.c.bf16 %v1645, %v1644
        %v1651 = vpack.c.bf16 %v1647, %v1646
        %v1652 = vld [vmem:[%s7] sm:$0xf]
        %v1653 = vld [vmem:[%s7 + $0x4] sm:$0xf]
        %v1654 = vld [vmem:[%s7 + $0x8] sm:$0xf]
        %v1655 = vld [vmem:[%s7 + $0xc] sm:$0xf]
        %v1656 = vld [vmem:[%s8] sm:$0x1]
        %v1658 = vperm.slane %v1656, 0
        %v1664 = vunpack.c.l.b16 %v1652
        %v1665 = vunpack.c.l.b16 %v1653
        %v1666 = vunpack.c.l.b16 %v1654
        %v1667 = vunpack.c.l.b16 %v1655
        %v1668 = vpack.c.b16 %v1665, %v1664
        %v1669 = vpack.c.b16 %v1667, %v1666
        %v1673 = vsel %vm497, %v1648, 0
        %v1676 = vsel %vm497, %v1649, 0
        %v1679 = vsel %vm497, %v1650, 0
        %v1682 = vsel %vm497, %v1651, 0
        %1684 = vmatpush.bf16.msra.mxu0 0
        %1685 = vmatpush.bf16.msra.mxu0 0
        %1686 = vmatpush.bf16.msra.mxu0 0
        %1687 = vmatpush.bf16.msra.mxu0 0
        %1688 = vmatpush.bf16.msra.mxu0 0
        %1689 = vmatpush.bf16.msra.mxu0 0
        %1690 = vmatpush.bf16.msra.mxu0 %v1669
        %1691 = vmatpush.bf16.msra.mxu0 %v1668
        %1692 = vmatmul.bf16.gmra.mxu0 %v1673
        %v1693 = vpop.f32.mrf.mxu0
        %v1694 = vadd.f32 %v1658, %v1693
        %v1695 = vpop.f32.mrf.mxu0
        %v1696 = vadd.f32 %v1658, %v1695
        %1697 = vmatmul.bf16.gmra.mxu0 %v1676
        %v1698 = vpop.f32.mrf.mxu0
        %v1699 = vadd.f32 %v1658, %v1698
        %v1700 = vpop.f32.mrf.mxu0
        %v1701 = vadd.f32 %v1658, %v1700
        %1702 = vmatmul.bf16.gmra.mxu0 %v1679
        %v1703 = vpop.f32.mrf.mxu0
        %v1704 = vadd.f32 %v1658, %v1703
        %v1705 = vpop.f32.mrf.mxu0
        %v1706 = vadd.f32 %v1658, %v1705
        %1707 = vmatmul.bf16.gmra.mxu0 %v1682
        %v1708 = vpop.f32.mrf.mxu0
        %v1709 = vadd.f32 %v1658, %v1708
        %v1710 = vpop.f32.mrf.mxu0
        %v1711 = vadd.f32 %v1658, %v1710
        %1712 = vdwg.mxu0
        %vm1713 = vcmask 64512
        %1714 = vst.msk [vmem:[%s397] sm:$0xff] %vm1713, %v1694
        %1715 = vst.msk [vmem:[%s397 + $0x8] sm:$0xff] %vm1713, %v1696
        %1716 = vst.msk [vmem:[%s397 + $0x10] sm:$0xff] %vm1713, %v1699
        %1717 = vst.msk [vmem:[%s397 + $0x18] sm:$0xff] %vm1713, %v1701
        %1718 = vst.msk [vmem:[%s397 + $0x20] sm:$0xff] %vm1713, %v1704
        %1719 = vst.msk [vmem:[%s397 + $0x28] sm:$0xff] %vm1713, %v1706
        %1720 = vst.msk [vmem:[%s397 + $0x30] sm:$0xff] %vm1713, %v1709
        %1721 = vst.msk [vmem:[%s397 + $0x38] sm:$0xff] %vm1713, %v1711
        %s1722 = sand.u32 %s222, 1
        %s1723 = sand.u32 %s222, 1
        %s1724 = smul.addr %s1723, 64
        %s1725 = scalar_lea.vmem [#allocation4], %s1724
        // Predicated region
        $region98: #{lstm_model_forward.1} parent=92 // pred_check
          %p1726 = pneg %p232
        $region99: #{lstm_model_forward.1} parent=92 // pred_check_branch
          %1728 = sbr.rel (%p1726) target = $region101
        $region100: #{lstm_model_forward.1} parent=92 // pred_region
          %s1729 = smul.addr %s20, 8
          %s1730 = scalar_lea.vmem %s9, %s1729
          // Predicated region
          $region102: #{lstm_model_forward.1} parent=100 // pred_check
            _
          $region103: #{lstm_model_forward.1} parent=100 // pred_check_branch
            %1732 = sbr.rel (0) target = $region105
          $region104: #{lstm_model_forward.1} parent=100 // pred_region
            // Predicated region
            $region106: #{lstm_model_forward.1} parent=104 // pred_check
              _
            $region107: #{lstm_model_forward.1} parent=104 // pred_check_branch
              %1734 = sbr.rel (0) target = $region109
            $region108: #{lstm_model_forward.1} parent=104 // pred_region
              // Predicated region
              $region121: #{lstm_model_forward.1} parent=108 // pred_check
                _
              $region122: #{lstm_model_forward.1} parent=108 // pred_check_branch
                %1764 = sbr.rel (0) target = $region124
              $region123: #{lstm_model_forward.1} parent=108 // pred_region
                loop: start=0, step=1, limit=1
                $region125: #{lstm_model_forward.1} parent=123 // loop_pre_header
                  _
                $region126: #{lstm_model_forward.1} parent=123 // loop_header
                  %s1766 = sphi 0, %s1770
                  %p1767 = scmp.ge.s32.totalorder %s1766, 1
                  %s1771 = sphi %s1725, %s1725
                  %s1772 = sphi %s1730, %s1730
                $region127: #{lstm_model_forward.1} parent=123 // loop_header_branch
                  %1769 = sbr.rel (%p1767) target = $region131
                $region128: #{lstm_model_forward.1} parent=123 // loop_body
                  %v1773 = vld [vmem:[%s1771] sm:$0xff]
                  %1774 = vst [vmem:[%s1772] sm:$0xff] %v1773
                  %v1775 = vld [vmem:[%s1771 + $0x8] sm:$0xff]
                  %1776 = vst [vmem:[%s1772 + $0x10] sm:$0xff] %v1775
                  %v1777 = vld [vmem:[%s1771 + $0x10] sm:$0xff]
                  %1778 = vst [vmem:[%s1772 + $0x20] sm:$0xff] %v1777
                  %v1779 = vld [vmem:[%s1771 + $0x18] sm:$0xff]
                  %1780 = vst [vmem:[%s1772 + $0x30] sm:$0xff] %v1779
                  %v1781 = vld [vmem:[%s1771 + $0x20] sm:$0xff]
                  %1782 = vst [vmem:[%s1772 + $0x40] sm:$0xff] %v1781
                  %v1783 = vld [vmem:[%s1771 + $0x28] sm:$0xff]
                  %1784 = vst [vmem:[%s1772 + $0x50] sm:$0xff] %v1783
                  %v1785 = vld [vmem:[%s1771 + $0x30] sm:$0xff]
                  %1786 = vst [vmem:[%s1772 + $0x60] sm:$0xff] %v1785
                  %v1787 = vld [vmem:[%s1771 + $0x38] sm:$0xff]
                  %1788 = vst [vmem:[%s1772 + $0x70] sm:$0xff] %v1787
                $region129: #{lstm_model_forward.1} parent=123 // loop_footer
                  %s1770 = sadd.s32 1, %s1766
                $region130: #{lstm_model_forward.1} parent=123 // loop_footer_branch
                  %1765 = sbr.rel target = $region126
                $region131: #{lstm_model_forward.1} parent=123 // loop_exit
                  _
              $region124: #{lstm_model_forward.1} parent=108 // pred_fallthru
                _
              // Predicated region
              $region132: #{lstm_model_forward.1} parent=108 // pred_check
                _
              $region133: #{lstm_model_forward.1} parent=108 // pred_check_branch
                %1790 = sbr.rel target = $region135
              $region134: #{lstm_model_forward.1} parent=108 // pred_region
                _
              $region135: #{lstm_model_forward.1} parent=108 // pred_fallthru
                _
            $region109: #{lstm_model_forward.1} parent=104 // pred_fallthru
              _
            // Predicated region
            $region110: #{lstm_model_forward.1} parent=104 // pred_check
              _
            $region111: #{lstm_model_forward.1} parent=104 // pred_check_branch
              %1736 = sbr.rel target = $region113
            $region112: #{lstm_model_forward.1} parent=104 // pred_region
              %s1738 = ssub.s32 256, 1
              loop: start=0, step=1, limit=1
              $region114: #{lstm_model_forward.1} parent=112 // loop_pre_header
                _
              $region115: #{lstm_model_forward.1} parent=112 // loop_header
                %s1740 = sphi 0, %s1744
                %p1741 = scmp.ge.s32.totalorder %s1740, 1
                %s1745 = sphi %s1725, %s1725
                %s1746 = sphi %s1730, %s1730
              $region116: #{lstm_model_forward.1} parent=112 // loop_header_branch
                %1743 = sbr.rel (%p1741) target = $region120
              $region117: #{lstm_model_forward.1} parent=112 // loop_body
                %v1747 = vld [vmem:[%s1745] sm:%s1738]
                %1748 = vst [vmem:[%s1746] sm:%s1738] %v1747
                %v1749 = vld [vmem:[%s1745 + $0x8] sm:%s1738]
                %1750 = vst [vmem:[%s1746 + $0x10] sm:%s1738] %v1749
                %v1751 = vld [vmem:[%s1745 + $0x10] sm:%s1738]
                %1752 = vst [vmem:[%s1746 + $0x20] sm:%s1738] %v1751
                %v1753 = vld [vmem:[%s1745 + $0x18] sm:%s1738]
                %1754 = vst [vmem:[%s1746 + $0x30] sm:%s1738] %v1753
                %v1755 = vld [vmem:[%s1745 + $0x20] sm:%s1738]
                %1756 = vst [vmem:[%s1746 + $0x40] sm:%s1738] %v1755
                %v1757 = vld [vmem:[%s1745 + $0x28] sm:%s1738]
                %1758 = vst [vmem:[%s1746 + $0x50] sm:%s1738] %v1757
                %v1759 = vld [vmem:[%s1745 + $0x30] sm:%s1738]
                %1760 = vst [vmem:[%s1746 + $0x60] sm:%s1738] %v1759
                %v1761 = vld [vmem:[%s1745 + $0x38] sm:%s1738]
                %1762 = vst [vmem:[%s1746 + $0x70] sm:%s1738] %v1761
              $region118: #{lstm_model_forward.1} parent=112 // loop_footer
                %s1744 = sadd.s32 1, %s1740
              $region119: #{lstm_model_forward.1} parent=112 // loop_footer_branch
                %1739 = sbr.rel target = $region115
              $region120: #{lstm_model_forward.1} parent=112 // loop_exit
                _
            $region113: #{lstm_model_forward.1} parent=104 // pred_fallthru
              _
          $region105: #{lstm_model_forward.1} parent=100 // pred_fallthru
            _
          %1791 = vnop
        $region101: #{lstm_model_forward.1} parent=92 // pred_fallthru
          _
      $region93: #{lstm_model_forward.1} parent=5 // pred_fallthru
        _
      %p1792 = scmp.le.s32.totalorder 2, %s15
      // Predicated region
      $region136: #{lstm_model_forward.1} parent=5 // pred_check
        %p1793 = pneg %p1792
      $region137: #{lstm_model_forward.1} parent=5 // pred_check_branch
        %1795 = sbr.rel (%p1793) target = $region139
      $region138: #{lstm_model_forward.1} parent=5 // pred_region
        %s1796 = ssub.s32 %s15, 2
        // Predicated region
        $region140: #{lstm_model_forward.1} parent=138 // pred_check
          %p1797 = pneg %p238
        $region141: #{lstm_model_forward.1} parent=138 // pred_check_branch
          %1799 = sbr.rel (%p1797) target = $region143
        $region142: #{lstm_model_forward.1} parent=138 // pred_region
          %s1800 = sand.u32 %s223, 1
          %s1801 = sand.u32 %s223, 1
          %s1802 = smul.addr %s1801, 64
          %s1803 = scalar_lea.vmem [#allocation4], %s1802
        $region143: #{lstm_model_forward.1} parent=138 // pred_fallthru
          _
      $region139: #{lstm_model_forward.1} parent=5 // pred_fallthru
        _
    $region6: #{lstm_model_forward.1} parent=1 // loop_footer
      %s19 = sadd.s32 1, %s15
    $region7: #{lstm_model_forward.1} parent=1 // loop_footer_branch
      %14 = sbr.rel target = $region3
    $region8: #{lstm_model_forward.1} parent=1 // loop_exit
      _

</llo_original>
